<compile_context>
chip_gen: v6e
topology: v6e:2x2x1
jax: 0.10.0
libtpu: 0.0.40
codegen_flags: <defaults>
</compile_context>

<pallas_src>
import jax
import jax.numpy as jnp
from jax import lax
from jax.experimental import pallas as pl
from jax.experimental.pallas import tpu as pltpu


# ----------------------------- Pallas kernel --------------------------------

def _nonlocal_kernel(x_ref, x2_ref,
                     wth_ref, bth_ref, wph_ref, bph_ref,
                     wg_ref, bg_ref, ww_ref, bw_ref,
                     o_ref):
    # x_ref block: (1, n, c); x2_ref block: (1, m, c)
    x = x_ref[0]                                    # [n, c]  f32
    x2 = x2_ref[0]                                  # [m, c]  f32
    x_bf = x.astype(jnp.bfloat16)
    x2_bf = x2.astype(jnp.bfloat16)

    # 1x1-conv projections == channel matmuls (weights stored [Cin, Cout], bf16)
    theta = jnp.dot(x_bf, wth_ref[...],
                    preferred_element_type=jnp.float32) + bth_ref[...]   # [n, ci]
    phi = jnp.dot(x2_bf, wph_ref[...],
                  preferred_element_type=jnp.float32) + bph_ref[...]     # [m, ci]
    g = jnp.dot(x2_bf, wg_ref[...],
                preferred_element_type=jnp.float32) + bg_ref[...]        # [m, ci]

    # f = theta @ phi^T : contract the inter-channel axis (MXU, bf16 in / f32 acc)
    f = lax.dot_general(theta.astype(jnp.bfloat16), phi.astype(jnp.bfloat16),
                        (((1,), (1,)), ((), ())),
                        preferred_element_type=jnp.float32)              # [n, m]

    # softmax over m (f32)
    f = f - jnp.max(f, axis=-1, keepdims=True)
    p = jnp.exp(f)
    attn = p / jnp.sum(p, axis=-1, keepdims=True)

    # y = softmax(f) @ g
    y = jnp.dot(attn.astype(jnp.bfloat16), g.astype(jnp.bfloat16),
                preferred_element_type=jnp.float32)                      # [n, ci]

    # W branch (1x1 conv with eval-mode BN folded), then residual with x
    wy = jnp.dot(y.astype(jnp.bfloat16), ww_ref[...],
                 preferred_element_type=jnp.float32) + bw_ref[...]       # [n, c]
    z = wy + x                                                           # [n, c] f32

    # lane-dense store in the module's native [c, n] layout
    o_ref[0] = z.T.astype(o_ref.dtype)                                   # [c, n]


def nonlocal_forward(x, x2, params):
    """x: [b, c, n], x_2: [b, c, m] float32.  Returns z: [b, c, n] (PyTorch layout)."""
    b, c, n = x.shape
    _, _, m = x2.shape
    ci = params["w_theta"].shape[1]
    assert ci == c, "inter_channels defaults to in_channels in this module"

    x_nc = jnp.transpose(x, (0, 2, 1))     # [b, n, c] channel-last
    x2_mc = jnp.transpose(x2, (0, 2, 1))   # [b, m, c]

    out = pl.pallas_call(
        _nonlocal_kernel,
        out_shape=jax.ShapeDtypeStruct((b, c, n), jnp.float32),
        grid_spec=pltpu.PrefetchScalarGridSpec(
            num_scalar_prefetch=0,
            grid=(b,),
            in_specs=[
                pl.BlockSpec((1, n, c), lambda i: (i, 0, 0)),   # x   (channel-last)
                pl.BlockSpec((1, m, c), lambda i: (i, 0, 0)),   # x_2 (channel-last)
                pl.BlockSpec((c, ci), lambda i: (0, 0)),        # w_theta (bf16)
                pl.BlockSpec((1, ci), lambda i: (0, 0)),        # b_theta
                pl.BlockSpec((c, ci), lambda i: (0, 0)),        # w_phi   (bf16)
                pl.BlockSpec((1, ci), lambda i: (0, 0)),        # b_phi
                pl.BlockSpec((c, ci), lambda i: (0, 0)),        # w_g     (bf16)
                pl.BlockSpec((1, ci), lambda i: (0, 0)),        # b_g
                pl.BlockSpec((ci, c), lambda i: (0, 0)),        # w_w (BN-folded, bf16)
                pl.BlockSpec((1, c), lambda i: (0, 0)),         # b_w (BN-folded)
            ],
            out_specs=pl.BlockSpec((1, c, n), lambda i: (i, 0, 0)),
        ),
        compiler_params=pltpu.CompilerParams(
            dimension_semantics=("parallel",)),
    )(x_nc, x2_mc,
      params["w_theta"], params["b_theta"],
      params["w_phi"], params["b_phi"],
      params["w_g"], params["b_g"],
      params["w_w"], params["b_w"])
    return out


# ------------------------- parameter construction ---------------------------

def _fold_conv_bn(w, conv_b, gamma, beta, mean, var, eps=1e-5):
    """Fold Conv1d(k=1) weight [Cin, Cout] + bias with eval-mode BatchNorm1d."""
    scale = gamma / jnp.sqrt(var + eps)                # [Cout]
    w_fold = w * scale[None, :]                        # [Cin, Cout]
    b_fold = (conv_b - mean) * scale + beta            # [Cout]
    return w_fold, b_fold.reshape(1, -1)


def make_params(key, in_ch, inter_ch):
    """Deterministic synthetic parameters.

    Note: the PyTorch module initializes the BN gamma/beta of the W branch to
    zero (so W_y == 0 at init); we use non-trivial BN parameters here so the
    test actually exercises that path, matching a trained/eval-mode module.
    """
    def nxt():
        nonlocal key
        key, sub = jax.random.split(key)
        return sub

    def conv(cin, cout):
        w = 0.2 * jax.random.normal(nxt(), (cin, cout), jnp.float32)
        bias = 0.05 * jax.random.normal(nxt(), (cout,), jnp.float32)
        return w, bias

    w_theta, b_theta = conv(in_ch, inter_ch)
    w_phi, b_phi = conv(in_ch, inter_ch)
    w_g, b_g = conv(in_ch, inter_ch)

    # W branch: Conv1d(inter -> inter) + BatchNorm1d (eval-mode running stats).
    w_w, bias_w = conv(inter_ch, inter_ch)
    gamma = 1.0 + 0.1 * jax.random.normal(nxt(), (inter_ch,), jnp.float32)
    beta = 0.1 * jax.random.normal(nxt(), (inter_ch,), jnp.float32)
    mean = 0.05 * jax.random.normal(nxt(), (inter_ch,), jnp.float32)
    var = 1.0 + 0.1 * jax.random.uniform(nxt(), (inter_ch,), jnp.float32)
    w_w, b_w = _fold_conv_bn(w_w, bias_w, gamma, beta, mean, var)

    return {
        "w_theta": w_theta.astype(jnp.bfloat16), "b_theta": b_theta.reshape(1, -1),
        "w_phi": w_phi.astype(jnp.bfloat16), "b_phi": b_phi.reshape(1, -1),
        "w_g": w_g.astype(jnp.bfloat16), "b_g": b_g.reshape(1, -1),
        "w_w": w_w.astype(jnp.bfloat16), "b_w": b_w,
    }


# ------------------------------ JAX reference --------------------------------

def reference_forward(x, x2, params):
    """Pure-JAX reference with the same bf16 matmul / f32 accumulate precision."""
    xt = jnp.transpose(x, (0, 2, 1))     # [b, n, c]
    x2t = jnp.transpose(x2, (0, 2, 1))   # [b, m, c]
    bf = lambda a: a.astype(jnp.bfloat16)

    theta = jnp.einsum("bnc,ci->bni", bf(xt), params["w_theta"],
                       preferred_element_type=jnp.float32) + params["b_theta"]
    phi = jnp.einsum("bmc,ci->bmi", bf(x2t), params["w_phi"],
                     preferred_element_type=jnp.float32) + params["b_phi"]
    g = jnp.einsum("bmc,ci->bmi", bf(x2t), params["w_g"],
                   preferred_element_type=jnp.float32) + params["b_g"]

    f = jnp.einsum("bni,bmi->bnm", bf(theta), bf(phi),
                   preferred_element_type=jnp.float32)
    attn = jax.nn.softmax(f, axis=-1)
    y = jnp.einsum("bnm,bmi->bni", bf(attn), bf(g),
                   preferred_element_type=jnp.float32)
    wy = jnp.einsum("bni,ic->bnc", bf(y), params["w_w"],
                    preferred_element_type=jnp.float32) + params["b_w"]
    z = wy + xt
    return jnp.transpose(z, (0, 2, 1))   # [b, c, n]


# ---------------------------------- main -------------------------------------

if __name__ == "__main__":
    # NONLocal_block(in_channels=32) with inter_channels defaulting to in_channels.
    # x: [b, c, n], x_2: [b, c, m]
    in_channels = 32
    b, n, m = 2, 128, 128

    key = jax.random.PRNGKey(0)
    kx, kx2, kp = jax.random.split(key, 3)
    x = jax.random.normal(kx, (b, in_channels, n), jnp.float32)
    x2 = jax.random.normal(kx2, (b, in_channels, m), jnp.float32)
    params = make_params(kp, in_channels, in_channels)

    out = nonlocal_forward(x, x2, params)
    out = jax.block_until_ready(out)

    ref = reference_forward(x, x2, params)
    assert out.shape == (b, in_channels, n), out.shape
    max_err = float(jnp.max(jnp.abs(out - ref)))
    assert jnp.allclose(out, ref, atol=5e-3, rtol=5e-3), f"mismatch vs reference: {max_err}"

    print("KERNEL_OK")
</pallas_src>

<mosaic_0001>
module attributes {stable_mosaic.version = 11 : i64} {
  func.func @_nonlocal_kernel(%arg0: i32, %arg1: memref<1x128x32xf32, #tpu.memory_space<vmem>>, %arg2: memref<1x128x32xf32, #tpu.memory_space<vmem>>, %arg3: memref<32x32xbf16, #tpu.memory_space<vmem>>, %arg4: memref<1x32xf32, #tpu.memory_space<vmem>>, %arg5: memref<32x32xbf16, #tpu.memory_space<vmem>>, %arg6: memref<1x32xf32, #tpu.memory_space<vmem>>, %arg7: memref<32x32xbf16, #tpu.memory_space<vmem>>, %arg8: memref<1x32xf32, #tpu.memory_space<vmem>>, %arg9: memref<32x32xbf16, #tpu.memory_space<vmem>>, %arg10: memref<1x32xf32, #tpu.memory_space<vmem>>, %arg11: memref<1x32x128xf32, #tpu.memory_space<vmem>>) attributes {dimension_semantics = [#tpu.dimension_semantics<parallel>], iteration_bounds = array<i64: 2>, scalar_prefetch = 0 : i64, scratch_operands = 0 : i64, tpu.core_type = #tpu.core_type<tc>, window_params = [{transform_indices = @transform_0, window_bounds = array<i64: 1, 128, 32>}, {transform_indices = @transform_1, window_bounds = array<i64: 1, 128, 32>}, {pipeline_mode = #tpu.pipeline_mode<synchronous>, transform_indices = @transform_2, window_bounds = array<i64: 32, 32>}, {pipeline_mode = #tpu.pipeline_mode<synchronous>, transform_indices = @transform_3, window_bounds = array<i64: 1, 32>}, {pipeline_mode = #tpu.pipeline_mode<synchronous>, transform_indices = @transform_4, window_bounds = array<i64: 32, 32>}, {pipeline_mode = #tpu.pipeline_mode<synchronous>, transform_indices = @transform_5, window_bounds = array<i64: 1, 32>}, {pipeline_mode = #tpu.pipeline_mode<synchronous>, transform_indices = @transform_6, window_bounds = array<i64: 32, 32>}, {pipeline_mode = #tpu.pipeline_mode<synchronous>, transform_indices = @transform_7, window_bounds = array<i64: 1, 32>}, {pipeline_mode = #tpu.pipeline_mode<synchronous>, transform_indices = @transform_8, window_bounds = array<i64: 32, 32>}, {pipeline_mode = #tpu.pipeline_mode<synchronous>, transform_indices = @transform_9, window_bounds = array<i64: 1, 32>}, {transform_indices = @transform_10, window_bounds = array<i64: 1, 32, 128>}]} {
    %c0 = arith.constant 0 : index
    %c0_0 = arith.constant 0 : index
    %c0_1 = arith.constant 0 : index
    %0 = vector.load %arg1[%c0, %c0_0, %c0_1] : memref<1x128x32xf32, #tpu.memory_space<vmem>>, vector<1x128x32xf32>
    %1 = vector.shape_cast %0 : vector<1x128x32xf32> to vector<128x32xf32>
    %c0_2 = arith.constant 0 : index
    %c0_3 = arith.constant 0 : index
    %c0_4 = arith.constant 0 : index
    %2 = vector.load %arg2[%c0_2, %c0_3, %c0_4] : memref<1x128x32xf32, #tpu.memory_space<vmem>>, vector<1x128x32xf32>
    %3 = vector.shape_cast %2 : vector<1x128x32xf32> to vector<128x32xf32>
    %4 = arith.truncf %1 : vector<128x32xf32> to vector<128x32xbf16>
    %5 = arith.truncf %3 : vector<128x32xf32> to vector<128x32xbf16>
    %c0_5 = arith.constant 0 : index
    %c0_6 = arith.constant 0 : index
    %6 = vector.load %arg3[%c0_5, %c0_6] : memref<32x32xbf16, #tpu.memory_space<vmem>>, vector<32x32xbf16>
    %cst = arith.constant dense<0.000000e+00> : vector<128x32xf32>
    %7 = tpu.matmul %4, %6, %cst {dimension_numbers = #tpu.dot_dimension_numbers<[1], [0], [0], [1], [0, 0, 1, 1], [], []>} : vector<128x32xbf16>, vector<32x32xbf16>, vector<128x32xf32> -> vector<128x32xf32>
    %c0_7 = arith.constant 0 : index
    %c0_8 = arith.constant 0 : index
    %8 = vector.load %arg4[%c0_7, %c0_8] : memref<1x32xf32, #tpu.memory_space<vmem>>, vector<1x32xf32>
    %9 = vector.broadcast %8 : vector<1x32xf32> to vector<128x32xf32>
    %10 = arith.addf %7, %9 : vector<128x32xf32>
    %c0_9 = arith.constant 0 : index
    %c0_10 = arith.constant 0 : index
    %11 = vector.load %arg5[%c0_9, %c0_10] : memref<32x32xbf16, #tpu.memory_space<vmem>>, vector<32x32xbf16>
    %cst_11 = arith.constant dense<0.000000e+00> : vector<128x32xf32>
    %12 = tpu.matmul %5, %11, %cst_11 {dimension_numbers = #tpu.dot_dimension_numbers<[1], [0], [0], [1], [0, 0, 1, 1], [], []>} : vector<128x32xbf16>, vector<32x32xbf16>, vector<128x32xf32> -> vector<128x32xf32>
    %c0_12 = arith.constant 0 : index
    %c0_13 = arith.constant 0 : index
    %13 = vector.load %arg6[%c0_12, %c0_13] : memref<1x32xf32, #tpu.memory_space<vmem>>, vector<1x32xf32>
    %14 = vector.broadcast %13 : vector<1x32xf32> to vector<128x32xf32>
    %15 = arith.addf %12, %14 : vector<128x32xf32>
    %c0_14 = arith.constant 0 : index
    %c0_15 = arith.constant 0 : index
    %16 = vector.load %arg7[%c0_14, %c0_15] : memref<32x32xbf16, #tpu.memory_space<vmem>>, vector<32x32xbf16>
    %cst_16 = arith.constant dense<0.000000e+00> : vector<128x32xf32>
    %17 = tpu.matmul %5, %16, %cst_16 {dimension_numbers = #tpu.dot_dimension_numbers<[1], [0], [0], [1], [0, 0, 1, 1], [], []>} : vector<128x32xbf16>, vector<32x32xbf16>, vector<128x32xf32> -> vector<128x32xf32>
    %c0_17 = arith.constant 0 : index
    %c0_18 = arith.constant 0 : index
    %18 = vector.load %arg8[%c0_17, %c0_18] : memref<1x32xf32, #tpu.memory_space<vmem>>, vector<1x32xf32>
    %19 = vector.broadcast %18 : vector<1x32xf32> to vector<128x32xf32>
    %20 = arith.addf %17, %19 : vector<128x32xf32>
    %21 = arith.truncf %10 : vector<128x32xf32> to vector<128x32xbf16>
    %22 = arith.truncf %15 : vector<128x32xf32> to vector<128x32xbf16>
    %cst_19 = arith.constant dense<0.000000e+00> : vector<128x128xf32>
    %23 = tpu.matmul %21, %22, %cst_19 {dimension_numbers = #tpu.dot_dimension_numbers<[1], [1], [0], [0], [0, 0, 1, 0], [], []>} : vector<128x32xbf16>, vector<128x32xbf16>, vector<128x128xf32> -> vector<128x128xf32>
    %cst_20 = arith.constant dense<0xFF800000> : vector<128xf32>
    %24 = vector.multi_reduction <maximumf>, %23, %cst_20 [1] : vector<128x128xf32> to vector<128xf32>
    %25 = vector.shape_cast %24 : vector<128xf32> to vector<128x1xf32>
    %26 = vector.broadcast %25 : vector<128x1xf32> to vector<128x128xf32>
    %27 = arith.subf %23, %26 : vector<128x128xf32>
    %28 = math.exp %27 : vector<128x128xf32>
    %cst_21 = arith.constant dense<0.000000e+00> : vector<128xf32>
    %29 = vector.multi_reduction <add>, %28, %cst_21 [1] : vector<128x128xf32> to vector<128xf32>
    %30 = vector.shape_cast %29 : vector<128xf32> to vector<128x1xf32>
    %31 = vector.broadcast %30 : vector<128x1xf32> to vector<128x128xf32>
    %32 = arith.divf %28, %31 : vector<128x128xf32>
    %33 = arith.truncf %32 : vector<128x128xf32> to vector<128x128xbf16>
    %34 = arith.truncf %20 : vector<128x32xf32> to vector<128x32xbf16>
    %cst_22 = arith.constant dense<0.000000e+00> : vector<128x32xf32>
    %35 = tpu.matmul %33, %34, %cst_22 {dimension_numbers = #tpu.dot_dimension_numbers<[1], [0], [0], [1], [0, 0, 1, 1], [], []>} : vector<128x128xbf16>, vector<128x32xbf16>, vector<128x32xf32> -> vector<128x32xf32>
    %36 = arith.truncf %35 : vector<128x32xf32> to vector<128x32xbf16>
    %c0_23 = arith.constant 0 : index
    %c0_24 = arith.constant 0 : index
    %37 = vector.load %arg9[%c0_23, %c0_24] : memref<32x32xbf16, #tpu.memory_space<vmem>>, vector<32x32xbf16>
    %cst_25 = arith.constant dense<0.000000e+00> : vector<128x32xf32>
    %38 = tpu.matmul %36, %37, %cst_25 {dimension_numbers = #tpu.dot_dimension_numbers<[1], [0], [0], [1], [0, 0, 1, 1], [], []>} : vector<128x32xbf16>, vector<32x32xbf16>, vector<128x32xf32> -> vector<128x32xf32>
    %c0_26 = arith.constant 0 : index
    %c0_27 = arith.constant 0 : index
    %39 = vector.load %arg10[%c0_26, %c0_27] : memref<1x32xf32, #tpu.memory_space<vmem>>, vector<1x32xf32>
    %40 = vector.broadcast %39 : vector<1x32xf32> to vector<128x32xf32>
    %41 = arith.addf %38, %40 : vector<128x32xf32>
    %42 = arith.addf %41, %1 : vector<128x32xf32>
    %43 = tpu.transpose %42, [1, 0] : vector<128x32xf32> -> vector<32x128xf32>
    %c0_28 = arith.constant 0 : index
    %c0_29 = arith.constant 0 : index
    %c0_30 = arith.constant 0 : index
    %44 = vector.load %arg11[%c0_28, %c0_29, %c0_30] : memref<1x32x128xf32, #tpu.memory_space<vmem>>, vector<1x32x128xf32>
    %45 = vector.shape_cast %44 : vector<1x32x128xf32> to vector<32x128xf32>
    %46 = vector.shape_cast %43 : vector<32x128xf32> to vector<1x32x128xf32>
    tpu.vector_store %arg11[%c0_28, %c0_29, %c0_30], %46 {strides = array<i32>} : memref<1x32x128xf32, #tpu.memory_space<vmem>>, vector<1x32x128xf32>,
    return
  }
  func.func @transform_0(%arg0: i32) -> (i32, i32, i32) {
    %c0_i32 = arith.constant 0 : i32
    %c0_i32_0 = arith.constant 0 : i32
    %c0_i32_1 = arith.constant 0 : i32
    return %arg0, %c0_i32, %c0_i32_0 : i32, i32, i32
  }
  func.func @transform_1(%arg0: i32) -> (i32, i32, i32) {
    %c0_i32 = arith.constant 0 : i32
    %c0_i32_0 = arith.constant 0 : i32
    %c0_i32_1 = arith.constant 0 : i32
    return %arg0, %c0_i32, %c0_i32_0 : i32, i32, i32
  }
  func.func @transform_2(%arg0: i32) -> (i32, i32) {
    %c0_i32 = arith.constant 0 : i32
    %c0_i32_0 = arith.constant 0 : i32
    %c0_i32_1 = arith.constant 0 : i32
    return %c0_i32, %c0_i32_0 : i32, i32
  }
  func.func @transform_3(%arg0: i32) -> (i32, i32) {
    %c0_i32 = arith.constant 0 : i32
    %c0_i32_0 = arith.constant 0 : i32
    %c0_i32_1 = arith.constant 0 : i32
    return %c0_i32, %c0_i32_0 : i32, i32
  }
  func.func @transform_4(%arg0: i32) -> (i32, i32) {
    %c0_i32 = arith.constant 0 : i32
    %c0_i32_0 = arith.constant 0 : i32
    %c0_i32_1 = arith.constant 0 : i32
    return %c0_i32, %c0_i32_0 : i32, i32
  }
  func.func @transform_5(%arg0: i32) -> (i32, i32) {
    %c0_i32 = arith.constant 0 : i32
    %c0_i32_0 = arith.constant 0 : i32
    %c0_i32_1 = arith.constant 0 : i32
    return %c0_i32, %c0_i32_0 : i32, i32
  }
  func.func @transform_6(%arg0: i32) -> (i32, i32) {
    %c0_i32 = arith.constant 0 : i32
    %c0_i32_0 = arith.constant 0 : i32
    %c0_i32_1 = arith.constant 0 : i32
    return %c0_i32, %c0_i32_0 : i32, i32
  }
  func.func @transform_7(%arg0: i32) -> (i32, i32) {
    %c0_i32 = arith.constant 0 : i32
    %c0_i32_0 = arith.constant 0 : i32
    %c0_i32_1 = arith.constant 0 : i32
    return %c0_i32, %c0_i32_0 : i32, i32
  }
  func.func @transform_8(%arg0: i32) -> (i32, i32) {
    %c0_i32 = arith.constant 0 : i32
    %c0_i32_0 = arith.constant 0 : i32
    %c0_i32_1 = arith.constant 0 : i32
    return %c0_i32, %c0_i32_0 : i32, i32
  }
  func.func @transform_9(%arg0: i32) -> (i32, i32) {
    %c0_i32 = arith.constant 0 : i32
    %c0_i32_0 = arith.constant 0 : i32
    %c0_i32_1 = arith.constant 0 : i32
    return %c0_i32, %c0_i32_0 : i32, i32
  }
  func.func @transform_10(%arg0: i32) -> (i32, i32, i32) {
    %c0_i32 = arith.constant 0 : i32
    %c0_i32_0 = arith.constant 0 : i32
    %c0_i32_1 = arith.constant 0 : i32
    return %arg0, %c0_i32, %c0_i32_0 : i32, i32, i32
  }
}

</mosaic_0001>

<llo_original>
// kernel: tpu_custom_call.1
$region0: #{tpu_custom_call.1}
  #allocation0 [shape = 'u32[]', space=smem, size = 0x4, offset = 0x4, fixed_abs, tag = 'smem constant byte address 0x4 - core index']
  #allocation1 [shape = 'u32[144,128]{1,0:T(1,128)}', space=vmem, size = 0x12000, scoped, tag = 'internal scratch']
  %s0 = inlined_call_operand.vmem [shape: f32[2,128,32], index: 0, kind: input, shape index: {}]
  %s1 = inlined_call_operand.vmem [shape: f32[2,128,32], index: 1, kind: input, shape index: {}]
  %s2 = inlined_call_operand.vmem [shape: bf16[32,32], index: 2, kind: input, shape index: {}]
  %s3 = inlined_call_operand.vmem [shape: f32[1,32], index: 3, kind: input, shape index: {}]
  %s4 = inlined_call_operand.vmem [shape: bf16[32,32], index: 4, kind: input, shape index: {}]
  %s5 = inlined_call_operand.vmem [shape: f32[1,32], index: 5, kind: input, shape index: {}]
  %s6 = inlined_call_operand.vmem [shape: bf16[32,32], index: 6, kind: input, shape index: {}]
  %s7 = inlined_call_operand.vmem [shape: f32[1,32], index: 7, kind: input, shape index: {}]
  %s8 = inlined_call_operand.vmem [shape: bf16[32,32], index: 8, kind: input, shape index: {}]
  %s9 = inlined_call_operand.vmem [shape: f32[1,32], index: 9, kind: input, shape index: {}]
  %s10 = inlined_call_operand.hbm [shape: f32[2,32,128], index: 10, kind: output, shape index: {}]
  %s11 = sld [smem:[#allocation0]]
  $region73: #{tpu_custom_call.1} parent=0
    _
  %s13 = ssub.s32 1, %s11
  %s14 = scalar_select 0, %s13, %s11
  $region1: #{tpu_custom_call.1} parent=0
    #allocation2 [shape = 'u8[32768]{0}', space=vmem, size = 0x8000, scoped, tag = 'output window, operand 0']
    #allocation3 [shape = 's32[2]{0}', space=sflag, size = 0x8, scoped, tag = 'scoped memory for tpu_custom_call.1']
    %15 = vsyncpa [#allocation3], 0
    %s16 = scalar_lea.sflag [#allocation3], 1
    %17 = vsyncpa %s16, 0
    loop: start=0, step=1, limit=4
    $region2: #{tpu_custom_call.1} parent=1 // loop_pre_header
      _
    $region3: #{tpu_custom_call.1} parent=1 // loop_header
      %s19 = sphi 0, %s23
      %p20 = scmp.ge.s32.totalorder %s19, 4
      %s29 = sphi 0, %s31
      %s32 = sphi 0, %s29
      %s33 = sphi 0, %s32
      %s49 = sphi 0, %s33
      %s55 = sphi 0, %s57
      %s58 = sphi 0, %s55
      %s59 = sphi 0, %s58
      %s75 = sphi 0, %s59
      %s79 = sphi 0, %s79
      %s81 = sphi 0, %s79
      %s82 = sphi 0, %s81
      %s96 = sphi 0, %s82
      %s100 = sphi 0, %s100
      %s102 = sphi 0, %s100
      %s103 = sphi 0, %s102
      %s117 = sphi 0, %s103
      %s121 = sphi 0, %s121
      %s123 = sphi 0, %s121
      %s124 = sphi 0, %s123
      %s138 = sphi 0, %s124
      %s142 = sphi 0, %s142
      %s144 = sphi 0, %s142
      %s145 = sphi 0, %s144
      %s159 = sphi 0, %s145
      %s163 = sphi 0, %s163
      %s165 = sphi 0, %s163
      %s166 = sphi 0, %s165
      %s180 = sphi 0, %s166
      %s184 = sphi 0, %s184
      %s186 = sphi 0, %s184
      %s187 = sphi 0, %s186
      %s201 = sphi 0, %s187
      %s205 = sphi 0, %s205
      %s207 = sphi 0, %s205
      %s208 = sphi 0, %s207
      %s222 = sphi 0, %s208
      %s226 = sphi 0, %s226
      %s228 = sphi 0, %s226
      %s229 = sphi 0, %s228
      %s243 = sphi 0, %s229
      %s249 = sphi 0, %s251
      %s252 = sphi 0, %s249
      %s253 = sphi 0, %s252
      %s269 = sphi 0, %s253
    $region4: #{tpu_custom_call.1} parent=1 // loop_header_branch
      %22 = sbr.rel (%p20) target = $region8
    $region5: #{tpu_custom_call.1} parent=1 // loop_body
      %s24 = ssub.s32 %s19, 1
      %s25 = ssub.s32 %s19, 2
      %s26 = sadd.s32 %s19, 1
      %s27 = ssub.s32 %s19, %s26
      %p28 = scmp.eq.s32.totalorder %s27, 0
      %s30 = sadd.s32 %s29, 1
      %s31 = scalar_select %p28, %s29, %s30
      %p34 = pneg %p28
      %p35 = scmp.eq.s32.totalorder %s19, 1
      %p36 = por %p34, %p35
      %p37 = scmp.ne.s32.totalorder %s29, %s32
      %p38 = scmp.eq.s32.totalorder %s19, 0
      %p39 = por %p37, %p38
      %p40 = scmp.ne.s32.totalorder %s29, %s32
      %p41 = scmp.eq.s32.totalorder %s24, 1
      %p42 = por %p40, %p41
      %p43 = scmp.ne.s32.totalorder %s32, %s33
      %p44 = scmp.eq.s32.totalorder %s24, 0
      %p45 = por %p43, %p44
      %p46 = scmp.ne.s32.totalorder %s32, %s33
      %p47 = scmp.eq.s32.totalorder %s25, 1
      %p48 = por %p46, %p47
      %p50 = scmp.ne.s32.totalorder %s33, %s49
      %p51 = scmp.eq.s32.totalorder %s25, 0
      %p52 = por %p50, %p51
      %s53 = ssub.s32 %s19, %s26
      %p54 = scmp.eq.s32.totalorder %s53, 0
      %s56 = sadd.s32 %s55, 1
      %s57 = scalar_select %p54, %s55, %s56
      %p60 = pneg %p54
      %p61 = scmp.eq.s32.totalorder %s19, 1
      %p62 = por %p60, %p61
      %p63 = scmp.ne.s32.totalorder %s55, %s58
      %p64 = scmp.eq.s32.totalorder %s19, 0
      %p65 = por %p63, %p64
      %p66 = scmp.ne.s32.totalorder %s55, %s58
      %p67 = scmp.eq.s32.totalorder %s24, 1
      %p68 = por %p66, %p67
      %p69 = scmp.ne.s32.totalorder %s58, %s59
      %p70 = scmp.eq.s32.totalorder %s24, 0
      %p71 = por %p69, %p70
      %p72 = scmp.ne.s32.totalorder %s58, %s59
      %p73 = scmp.eq.s32.totalorder %s25, 1
      %p74 = por %p72, %p73
      %p76 = scmp.ne.s32.totalorder %s59, %s75
      %p77 = scmp.eq.s32.totalorder %s25, 0
      %p78 = por %p76, %p77
      %s80 = sadd.s32 %s79, 1
      %p83 = scmp.eq.s32.totalorder %s19, 1
      %p84 = scmp.ne.s32.totalorder %s79, %s81
      %p85 = scmp.eq.s32.totalorder %s19, 0
      %p86 = por %p84, %p85
      %p87 = scmp.ne.s32.totalorder %s79, %s81
      %p88 = scmp.eq.s32.totalorder %s24, 1
      %p89 = por %p87, %p88
      %p90 = scmp.ne.s32.totalorder %s81, %s82
      %p91 = scmp.eq.s32.totalorder %s24, 0
      %p92 = por %p90, %p91
      %p93 = scmp.ne.s32.totalorder %s81, %s82
      %p94 = scmp.eq.s32.totalorder %s25, 1
      %p95 = por %p93, %p94
      %p97 = scmp.ne.s32.totalorder %s82, %s96
      %p98 = scmp.eq.s32.totalorder %s25, 0
      %p99 = por %p97, %p98
      %s101 = sadd.s32 %s100, 1
      %p104 = scmp.eq.s32.totalorder %s19, 1
      %p105 = scmp.ne.s32.totalorder %s100, %s102
      %p106 = scmp.eq.s32.totalorder %s19, 0
      %p107 = por %p105, %p106
      %p108 = scmp.ne.s32.totalorder %s100, %s102
      %p109 = scmp.eq.s32.totalorder %s24, 1
      %p110 = por %p108, %p109
      %p111 = scmp.ne.s32.totalorder %s102, %s103
      %p112 = scmp.eq.s32.totalorder %s24, 0
      %p113 = por %p111, %p112
      %p114 = scmp.ne.s32.totalorder %s102, %s103
      %p115 = scmp.eq.s32.totalorder %s25, 1
      %p116 = por %p114, %p115
      %p118 = scmp.ne.s32.totalorder %s103, %s117
      %p119 = scmp.eq.s32.totalorder %s25, 0
      %p120 = por %p118, %p119
      %s122 = sadd.s32 %s121, 1
      %p125 = scmp.eq.s32.totalorder %s19, 1
      %p126 = scmp.ne.s32.totalorder %s121, %s123
      %p127 = scmp.eq.s32.totalorder %s19, 0
      %p128 = por %p126, %p127
      %p129 = scmp.ne.s32.totalorder %s121, %s123
      %p130 = scmp.eq.s32.totalorder %s24, 1
      %p131 = por %p129, %p130
      %p132 = scmp.ne.s32.totalorder %s123, %s124
      %p133 = scmp.eq.s32.totalorder %s24, 0
      %p134 = por %p132, %p133
      %p135 = scmp.ne.s32.totalorder %s123, %s124
      %p136 = scmp.eq.s32.totalorder %s25, 1
      %p137 = por %p135, %p136
      %p139 = scmp.ne.s32.totalorder %s124, %s138
      %p140 = scmp.eq.s32.totalorder %s25, 0
      %p141 = por %p139, %p140
      %s143 = sadd.s32 %s142, 1
      %p146 = scmp.eq.s32.totalorder %s19, 1
      %p147 = scmp.ne.s32.totalorder %s142, %s144
      %p148 = scmp.eq.s32.totalorder %s19, 0
      %p149 = por %p147, %p148
      %p150 = scmp.ne.s32.totalorder %s142, %s144
      %p151 = scmp.eq.s32.totalorder %s24, 1
      %p152 = por %p150, %p151
      %p153 = scmp.ne.s32.totalorder %s144, %s145
      %p154 = scmp.eq.s32.totalorder %s24, 0
      %p155 = por %p153, %p154
      %p156 = scmp.ne.s32.totalorder %s144, %s145
      %p157 = scmp.eq.s32.totalorder %s25, 1
      %p158 = por %p156, %p157
      %p160 = scmp.ne.s32.totalorder %s145, %s159
      %p161 = scmp.eq.s32.totalorder %s25, 0
      %p162 = por %p160, %p161
      %s164 = sadd.s32 %s163, 1
      %p167 = scmp.eq.s32.totalorder %s19, 1
      %p168 = scmp.ne.s32.totalorder %s163, %s165
      %p169 = scmp.eq.s32.totalorder %s19, 0
      %p170 = por %p168, %p169
      %p171 = scmp.ne.s32.totalorder %s163, %s165
      %p172 = scmp.eq.s32.totalorder %s24, 1
      %p173 = por %p171, %p172
      %p174 = scmp.ne.s32.totalorder %s165, %s166
      %p175 = scmp.eq.s32.totalorder %s24, 0
      %p176 = por %p174, %p175
      %p177 = scmp.ne.s32.totalorder %s165, %s166
      %p178 = scmp.eq.s32.totalorder %s25, 1
      %p179 = por %p177, %p178
      %p181 = scmp.ne.s32.totalorder %s166, %s180
      %p182 = scmp.eq.s32.totalorder %s25, 0
      %p183 = por %p181, %p182
      %s185 = sadd.s32 %s184, 1
      %p188 = scmp.eq.s32.totalorder %s19, 1
      %p189 = scmp.ne.s32.totalorder %s184, %s186
      %p190 = scmp.eq.s32.totalorder %s19, 0
      %p191 = por %p189, %p190
      %p192 = scmp.ne.s32.totalorder %s184, %s186
      %p193 = scmp.eq.s32.totalorder %s24, 1
      %p194 = por %p192, %p193
      %p195 = scmp.ne.s32.totalorder %s186, %s187
      %p196 = scmp.eq.s32.totalorder %s24, 0
      %p197 = por %p195, %p196
      %p198 = scmp.ne.s32.totalorder %s186, %s187
      %p199 = scmp.eq.s32.totalorder %s25, 1
      %p200 = por %p198, %p199
      %p202 = scmp.ne.s32.totalorder %s187, %s201
      %p203 = scmp.eq.s32.totalorder %s25, 0
      %p204 = por %p202, %p203
      %s206 = sadd.s32 %s205, 1
      %p209 = scmp.eq.s32.totalorder %s19, 1
      %p210 = scmp.ne.s32.totalorder %s205, %s207
      %p211 = scmp.eq.s32.totalorder %s19, 0
      %p212 = por %p210, %p211
      %p213 = scmp.ne.s32.totalorder %s205, %s207
      %p214 = scmp.eq.s32.totalorder %s24, 1
      %p215 = por %p213, %p214
      %p216 = scmp.ne.s32.totalorder %s207, %s208
      %p217 = scmp.eq.s32.totalorder %s24, 0
      %p218 = por %p216, %p217
      %p219 = scmp.ne.s32.totalorder %s207, %s208
      %p220 = scmp.eq.s32.totalorder %s25, 1
      %p221 = por %p219, %p220
      %p223 = scmp.ne.s32.totalorder %s208, %s222
      %p224 = scmp.eq.s32.totalorder %s25, 0
      %p225 = por %p223, %p224
      %s227 = sadd.s32 %s226, 1
      %p230 = scmp.eq.s32.totalorder %s19, 1
      %p231 = scmp.ne.s32.totalorder %s226, %s228
      %p232 = scmp.eq.s32.totalorder %s19, 0
      %p233 = por %p231, %p232
      %p234 = scmp.ne.s32.totalorder %s226, %s228
      %p235 = scmp.eq.s32.totalorder %s24, 1
      %p236 = por %p234, %p235
      %p237 = scmp.ne.s32.totalorder %s228, %s229
      %p238 = scmp.eq.s32.totalorder %s24, 0
      %p239 = por %p237, %p238
      %p240 = scmp.ne.s32.totalorder %s228, %s229
      %p241 = scmp.eq.s32.totalorder %s25, 1
      %p242 = por %p240, %p241
      %p244 = scmp.ne.s32.totalorder %s229, %s243
      %p245 = scmp.eq.s32.totalorder %s25, 0
      %p246 = por %p244, %p245
      %s247 = ssub.s32 %s19, %s26
      %p248 = scmp.eq.s32.totalorder %s247, 0
      %s250 = sadd.s32 %s249, 1
      %s251 = scalar_select %p248, %s249, %s250
      %p254 = pneg %p248
      %p255 = scmp.eq.s32.totalorder %s19, 1
      %p256 = por %p254, %p255
      %p257 = scmp.ne.s32.totalorder %s249, %s252
      %p258 = scmp.eq.s32.totalorder %s19, 0
      %p259 = por %p257, %p258
      %p260 = scmp.ne.s32.totalorder %s249, %s252
      %p261 = scmp.eq.s32.totalorder %s24, 1
      %p262 = por %p260, %p261
      %p263 = scmp.ne.s32.totalorder %s252, %s253
      %p264 = scmp.eq.s32.totalorder %s24, 0
      %p265 = por %p263, %p264
      %p266 = scmp.ne.s32.totalorder %s252, %s253
      %p267 = scmp.eq.s32.totalorder %s25, 1
      %p268 = por %p266, %p267
      %p270 = scmp.ne.s32.totalorder %s253, %s269
      %p271 = scmp.eq.s32.totalorder %s25, 0
      %p272 = por %p270, %p271
      %p273 = scmp.le.s32.totalorder 1, %s19
      %p274 = scmp.lt.s32.totalorder %s19, 3
      %p275 = pnand %p273, %p274
      %p276 = pneg %p275
      // Predicated region
      $region9: #{tpu_custom_call.1} parent=5 // pred_check
        _
      $region10: #{tpu_custom_call.1} parent=5 // pred_check_branch
        %278 = sbr.rel (%p275) target = $region12
      $region11: #{tpu_custom_call.1} parent=5 // pred_region
        %s279 = ssub.s32 %s19, 1
        // Predicated region
        $region13: #{tpu_custom_call.1} parent=11 // pred_check
          %p280 = pneg %p92
        $region14: #{tpu_custom_call.1} parent=11 // pred_check_branch
          %282 = sbr.rel (%p280) target = $region16
        $region15: #{tpu_custom_call.1} parent=11 // pred_region
          _
        $region16: #{tpu_custom_call.1} parent=11 // pred_fallthru
          _
        // Predicated region
        $region17: #{tpu_custom_call.1} parent=11 // pred_check
          %p283 = pneg %p113
        $region18: #{tpu_custom_call.1} parent=11 // pred_check_branch
          %285 = sbr.rel (%p283) target = $region20
        $region19: #{tpu_custom_call.1} parent=11 // pred_region
          _
        $region20: #{tpu_custom_call.1} parent=11 // pred_fallthru
          _
        // Predicated region
        $region21: #{tpu_custom_call.1} parent=11 // pred_check
          %p286 = pneg %p134
        $region22: #{tpu_custom_call.1} parent=11 // pred_check_branch
          %288 = sbr.rel (%p286) target = $region24
        $region23: #{tpu_custom_call.1} parent=11 // pred_region
          _
        $region24: #{tpu_custom_call.1} parent=11 // pred_fallthru
          _
        // Predicated region
        $region25: #{tpu_custom_call.1} parent=11 // pred_check
          %p289 = pneg %p155
        $region26: #{tpu_custom_call.1} parent=11 // pred_check_branch
          %291 = sbr.rel (%p289) target = $region28
        $region27: #{tpu_custom_call.1} parent=11 // pred_region
          _
        $region28: #{tpu_custom_call.1} parent=11 // pred_fallthru
          _
        // Predicated region
        $region29: #{tpu_custom_call.1} parent=11 // pred_check
          %p292 = pneg %p176
        $region30: #{tpu_custom_call.1} parent=11 // pred_check_branch
          %294 = sbr.rel (%p292) target = $region32
        $region31: #{tpu_custom_call.1} parent=11 // pred_region
          _
        $region32: #{tpu_custom_call.1} parent=11 // pred_fallthru
          _
        // Predicated region
        $region33: #{tpu_custom_call.1} parent=11 // pred_check
          %p295 = pneg %p197
        $region34: #{tpu_custom_call.1} parent=11 // pred_check_branch
          %297 = sbr.rel (%p295) target = $region36
        $region35: #{tpu_custom_call.1} parent=11 // pred_region
          _
        $region36: #{tpu_custom_call.1} parent=11 // pred_fallthru
          _
        // Predicated region
        $region37: #{tpu_custom_call.1} parent=11 // pred_check
          %p298 = pneg %p218
        $region38: #{tpu_custom_call.1} parent=11 // pred_check_branch
          %300 = sbr.rel (%p298) target = $region40
        $region39: #{tpu_custom_call.1} parent=11 // pred_region
          _
        $region40: #{tpu_custom_call.1} parent=11 // pred_fallthru
          _
        // Predicated region
        $region41: #{tpu_custom_call.1} parent=11 // pred_check
          %p301 = pneg %p239
        $region42: #{tpu_custom_call.1} parent=11 // pred_check_branch
          %303 = sbr.rel (%p301) target = $region44
        $region43: #{tpu_custom_call.1} parent=11 // pred_region
          _
        $region44: #{tpu_custom_call.1} parent=11 // pred_fallthru
          _
      $region12: #{tpu_custom_call.1} parent=5 // pred_fallthru
        _
      %p304 = scmp.lt.s32.totalorder %s19, 2
      // Predicated region
      $region45: #{tpu_custom_call.1} parent=5 // pred_check
        %p305 = pneg %p304
      $region46: #{tpu_custom_call.1} parent=5 // pred_check_branch
        %307 = sbr.rel (%p305) target = $region48
      $region47: #{tpu_custom_call.1} parent=5 // pred_region
        // Predicated region
        $region49: #{tpu_custom_call.1} parent=47 // pred_check
          %p308 = pneg %p39
        $region50: #{tpu_custom_call.1} parent=47 // pred_check_branch
          %310 = sbr.rel (%p308) target = $region52
        $region51: #{tpu_custom_call.1} parent=47 // pred_region
          %p311 = scmp.lt.s32.totalorder %s19, 1
          %s312 = scalar_select %p311, %s19, 1
          %s313 = smul.addr %s312, 16
          %s314 = smul.addr %s313, 8
          %s315 = scalar_lea.vmem %s0, %s314
        $region52: #{tpu_custom_call.1} parent=47 // pred_fallthru
          _
        // Predicated region
        $region53: #{tpu_custom_call.1} parent=47 // pred_check
          %p316 = pneg %p65
        $region54: #{tpu_custom_call.1} parent=47 // pred_check_branch
          %318 = sbr.rel (%p316) target = $region56
        $region55: #{tpu_custom_call.1} parent=47 // pred_region
          %p319 = scmp.lt.s32.totalorder %s19, 1
          %s320 = scalar_select %p319, %s19, 1
          %s321 = smul.addr %s320, 16
          %s322 = smul.addr %s321, 8
          %s323 = scalar_lea.vmem %s1, %s322
        $region56: #{tpu_custom_call.1} parent=47 // pred_fallthru
          _
      $region48: #{tpu_custom_call.1} parent=5 // pred_fallthru
        _
      %p324 = scmp.le.s32.totalorder 1, %s19
      %p325 = scmp.lt.s32.totalorder %s19, 3
      %p326 = pnand %p324, %p325
      %p327 = pneg %p326
      // Predicated region
      $region57: #{tpu_custom_call.1} parent=5 // pred_check
        _
      $region58: #{tpu_custom_call.1} parent=5 // pred_check_branch
        %329 = sbr.rel (%p326) target = $region60
      $region59: #{tpu_custom_call.1} parent=5 // pred_region
        %s330 = ssub.s32 %s19, 1
        %p331 = scmp.lt.s32.totalorder %s24, 1
        %s332 = scalar_select %p331, %s24, 1
        %s333 = smul.addr %s332, 16
        %s334 = smul.addr %s333, 8
        %s335 = scalar_lea.vmem %s0, %s334
        %p336 = pneg %p45
        %p337 = pneg %p42
        %p338 = scmp.lt.s32.totalorder %s24, 1
        %s339 = scalar_select %p338, %s24, 1
        %s340 = smul.addr %s339, 16
        %s341 = smul.addr %s340, 8
        %s342 = scalar_lea.vmem %s1, %s341
        %p343 = pneg %p71
        %p344 = pneg %p68
        %p345 = pneg %p92
        %p346 = pneg %p89
        %p347 = pneg %p113
        %p348 = pneg %p110
        %p349 = pneg %p134
        %p350 = pneg %p131
        %p351 = pneg %p155
        %p352 = pneg %p152
        %p353 = pneg %p176
        %p354 = pneg %p173
        %p355 = pneg %p197
        %p356 = pneg %p194
        %p357 = pneg %p218
        %p358 = pneg %p215
        %p359 = pneg %p239
        %p360 = pneg %p236
        %p361 = pneg %p265
        %p362 = pneg %p262
        %s363 = sand.u32 %s252, 1
        %s364 = scalar_lea.sflag [#allocation3], %s363
        %s365 = sand.u32 %s252, 1
        %s366 = smul.addr %s365, 32
        %s367 = scalar_lea.vmem [#allocation2], %s366
        %p368 = scmp.lt.s32.totalorder %s24, 1
        %s369 = scalar_select %p368, %s24, 1
        %s370 = smul.addr %s369, 16
        %s371 = smul.addr %s370, 8
        %s372 = scalar_lea.vmem %s0, %s371
        %p373 = scmp.lt.s32.totalorder %s24, 1
        %s374 = scalar_select %p373, %s24, 1
        %s375 = smul.addr %s374, 16
        %s376 = smul.addr %s375, 8
        %s377 = scalar_lea.vmem %s1, %s376
        %v379 = vld [vmem:[%s372] sm:$0xff]
        %v380 = vld [vmem:[%s372 + $0x8] sm:$0xff]
        %v381 = vld [vmem:[%s372 + $0x10] sm:$0xff]
        %v382 = vld [vmem:[%s372 + $0x18] sm:$0xff]
        %v383 = vld [vmem:[%s372 + $0x20] sm:$0xff]
        %v384 = vld [vmem:[%s372 + $0x28] sm:$0xff]
        %v385 = vld [vmem:[%s372 + $0x30] sm:$0xff]
        %v386 = vld [vmem:[%s372 + $0x38] sm:$0xff]
        %v387 = vld [vmem:[%s372 + $0x40] sm:$0xff]
        %v388 = vld [vmem:[%s372 + $0x48] sm:$0xff]
        %v389 = vld [vmem:[%s372 + $0x50] sm:$0xff]
        %v390 = vld [vmem:[%s372 + $0x58] sm:$0xff]
        %v391 = vld [vmem:[%s372 + $0x60] sm:$0xff]
        %v392 = vld [vmem:[%s372 + $0x68] sm:$0xff]
        %v393 = vld [vmem:[%s372 + $0x70] sm:$0xff]
        %v394 = vld [vmem:[%s372 + $0x78] sm:$0xff]
        %v395 = vld [vmem:[%s377] sm:$0xff]
        %v396 = vld [vmem:[%s377 + $0x8] sm:$0xff]
        %v397 = vld [vmem:[%s377 + $0x10] sm:$0xff]
        %v398 = vld [vmem:[%s377 + $0x18] sm:$0xff]
        %v399 = vld [vmem:[%s377 + $0x20] sm:$0xff]
        %v400 = vld [vmem:[%s377 + $0x28] sm:$0xff]
        %v401 = vld [vmem:[%s377 + $0x30] sm:$0xff]
        %v402 = vld [vmem:[%s377 + $0x38] sm:$0xff]
        %v403 = vld [vmem:[%s377 + $0x40] sm:$0xff]
        %v404 = vld [vmem:[%s377 + $0x48] sm:$0xff]
        %v405 = vld [vmem:[%s377 + $0x50] sm:$0xff]
        %v406 = vld [vmem:[%s377 + $0x58] sm:$0xff]
        %v407 = vld [vmem:[%s377 + $0x60] sm:$0xff]
        %v408 = vld [vmem:[%s377 + $0x68] sm:$0xff]
        %v409 = vld [vmem:[%s377 + $0x70] sm:$0xff]
        %v410 = vld [vmem:[%s377 + $0x78] sm:$0xff]
        %v411 = vpack.c.bf16 %v380, %v379
        %v412 = vpack.c.bf16 %v382, %v381
        %v413 = vpack.c.bf16 %v384, %v383
        %v414 = vpack.c.bf16 %v386, %v385
        %v415 = vpack.c.bf16 %v388, %v387
        %v416 = vpack.c.bf16 %v390, %v389
        %v417 = vpack.c.bf16 %v392, %v391
        %v418 = vpack.c.bf16 %v394, %v393
        %v419 = vpack.c.bf16 %v396, %v395
        %v420 = vpack.c.bf16 %v398, %v397
        %v421 = vpack.c.bf16 %v400, %v399
        %v422 = vpack.c.bf16 %v402, %v401
        %v423 = vpack.c.bf16 %v404, %v403
        %v424 = vpack.c.bf16 %v406, %v405
        %v425 = vpack.c.bf16 %v408, %v407
        %v426 = vpack.c.bf16 %v410, %v409
        %v427 = vld [vmem:[%s2] sm:$0xf]
        %v428 = vld [vmem:[%s2 + $0x4] sm:$0xf]
        %v429 = vld [vmem:[%s2 + $0x8] sm:$0xf]
        %v430 = vld [vmem:[%s2 + $0xc] sm:$0xf]
        %v431 = vld [vmem:[%s3] sm:$0x1]
        %v433 = vlaneseq
        %v434 = vshrl.u32 %v433, 7
        %v435 = vsub.s32 0, %v434
        %v436 = vrot.slane %v431, %v435
        %v442 = vunpack.c.l.b16 %v427
        %v443 = vunpack.c.l.b16 %v428
        %v444 = vunpack.c.l.b16 %v429
        %v445 = vunpack.c.l.b16 %v430
        %v446 = vpack.c.b16 %v443, %v442
        %v447 = vpack.c.b16 %v445, %v444
        %vm450 = vcmask 261120
        %v452 = vsel %vm450, %v411, 0
        %v455 = vsel %vm450, %v412, 0
        %v458 = vsel %vm450, %v413, 0
        %v461 = vsel %vm450, %v414, 0
        %v464 = vsel %vm450, %v415, 0
        %v467 = vsel %vm450, %v416, 0
        %v470 = vsel %vm450, %v417, 0
        %v473 = vsel %vm450, %v418, 0
        %475 = vmatprep.subr.bf16.mxu0 0
        %476 = vmatpush1.bf16.msra.mxu0 0
        %477 = vmatprep.subr.bf16.mxu0 0
        %478 = vmatpush1.bf16.msra.mxu0 0
        %479 = vmatprep.subr.bf16.mxu0 0
        %480 = vmatpush1.bf16.msra.mxu0 0
        %481 = vmatprep.subr.bf16.mxu0 0
        %482 = vmatpush1.bf16.msra.mxu0 0
        %483 = vmatprep.subr.bf16.mxu0 0
        %484 = vmatpush1.bf16.msra.mxu0 0
        %485 = vmatprep.subr.bf16.mxu0 0
        %486 = vmatpush1.bf16.msra.mxu0 0
        %487 = vmatprep.subr.bf16.mxu0 0
        %488 = vmatpush1.bf16.msra.mxu0 %v447
        %489 = vmatprep.subr.bf16.mxu0 0
        %490 = vmatpush1.bf16.msra.mxu0 %v446
        %491 = vmatprep.subr.bf16.mxu0 0
        %492 = vmatpush2.bf16.msra.mxu0 0
        %493 = vmatprep.subr.bf16.mxu0 0
        %494 = vmatpush2.bf16.msra.mxu0 0
        %495 = vmatprep.subr.bf16.mxu0 0
        %496 = vmatpush2.bf16.msra.mxu0 0
        %497 = vmatprep.subr.bf16.mxu0 0
        %498 = vmatpush2.bf16.msra.mxu0 0
        %499 = vmatprep.subr.bf16.mxu0 0
        %500 = vmatpush2.bf16.msra.mxu0 0
        %501 = vmatprep.subr.bf16.mxu0 0
        %502 = vmatpush2.bf16.msra.mxu0 0
        %503 = vmatprep.subr.bf16.mxu0 0
        %504 = vmatpush2.bf16.msra.mxu0 0
        %505 = vmatprep.subr.bf16.mxu0 0
        %506 = vmatpush2.bf16.msra.mxu0 0
        %507 = vmatprep.mubr.bf16.mxu0 0
        %508 = vmatmul.mubr.bf16.gmra.mxu0 %v452
        %v509 = vpop.f32.mrf.mxu0
        %v510 = vadd.f32 %v436, %v509
        %v511 = vpop.f32.mrf.mxu0
        %v512 = vpop.f32.mrf.mxu0
        %v513 = vadd.f32 %v436, %v512
        %v514 = vpop.f32.mrf.mxu0
        %515 = vmatprep.mubr.bf16.mxu0 0
        %516 = vmatmul.mubr.bf16.gmra.mxu0 %v455
        %v517 = vpop.f32.mrf.mxu0
        %v518 = vadd.f32 %v436, %v517
        %v519 = vpop.f32.mrf.mxu0
        %v520 = vpop.f32.mrf.mxu0
        %v521 = vadd.f32 %v436, %v520
        %v522 = vpop.f32.mrf.mxu0
        %523 = vmatprep.mubr.bf16.mxu0 0
        %524 = vmatmul.mubr.bf16.gmra.mxu0 %v458
        %v525 = vpop.f32.mrf.mxu0
        %v526 = vadd.f32 %v436, %v525
        %v527 = vpop.f32.mrf.mxu0
        %v528 = vpop.f32.mrf.mxu0
        %v529 = vadd.f32 %v436, %v528
        %v530 = vpop.f32.mrf.mxu0
        %531 = vmatprep.mubr.bf16.mxu0 0
        %532 = vmatmul.mubr.bf16.gmra.mxu0 %v461
        %v533 = vpop.f32.mrf.mxu0
        %v534 = vadd.f32 %v436, %v533
        %v535 = vpop.f32.mrf.mxu0
        %v536 = vpop.f32.mrf.mxu0
        %v537 = vadd.f32 %v436, %v536
        %v538 = vpop.f32.mrf.mxu0
        %539 = vmatprep.mubr.bf16.mxu0 0
        %540 = vmatmul.mubr.bf16.gmra.mxu0 %v464
        %v541 = vpop.f32.mrf.mxu0
        %v542 = vadd.f32 %v436, %v541
        %v543 = vpop.f32.mrf.mxu0
        %v544 = vpop.f32.mrf.mxu0
        %v545 = vadd.f32 %v436, %v544
        %v546 = vpop.f32.mrf.mxu0
        %547 = vmatprep.mubr.bf16.mxu0 0
        %548 = vmatmul.mubr.bf16.gmra.mxu0 %v467
        %v549 = vpop.f32.mrf.mxu0
        %v550 = vadd.f32 %v436, %v549
        %v551 = vpop.f32.mrf.mxu0
        %v552 = vpop.f32.mrf.mxu0
        %v553 = vadd.f32 %v436, %v552
        %v554 = vpop.f32.mrf.mxu0
        %555 = vmatprep.mubr.bf16.mxu0 0
        %556 = vmatmul.mubr.bf16.gmra.mxu0 %v470
        %v557 = vpop.f32.mrf.mxu0
        %v558 = vadd.f32 %v436, %v557
        %v559 = vpop.f32.mrf.mxu0
        %v560 = vpop.f32.mrf.mxu0
        %v561 = vadd.f32 %v436, %v560
        %v562 = vpop.f32.mrf.mxu0
        %563 = vmatprep.mubr.bf16.mxu0 0
        %564 = vmatmul.mubr.bf16.gmra.mxu0 %v473
        %v565 = vpop.f32.mrf.mxu0
        %v566 = vadd.f32 %v436, %v565
        %v567 = vpop.f32.mrf.mxu0
        %v568 = vpop.f32.mrf.mxu0
        %v569 = vadd.f32 %v436, %v568
        %v570 = vpop.f32.mrf.mxu0
        %571 = vdwg.mxu0
        %v572 = vld [vmem:[%s4] sm:$0xf]
        %v573 = vld [vmem:[%s4 + $0x4] sm:$0xf]
        %v574 = vld [vmem:[%s4 + $0x8] sm:$0xf]
        %v575 = vld [vmem:[%s4 + $0xc] sm:$0xf]
        %v576 = vld [vmem:[%s5] sm:$0x1]
        %v578 = vlaneseq
        %v579 = vshrl.u32 %v578, 7
        %v580 = vsub.s32 0, %v579
        %v581 = vrot.slane %v576, %v580
        %v587 = vunpack.c.l.b16 %v572
        %v588 = vunpack.c.l.b16 %v573
        %v589 = vunpack.c.l.b16 %v574
        %v590 = vunpack.c.l.b16 %v575
        %v591 = vpack.c.b16 %v588, %v587
        %v592 = vpack.c.b16 %v590, %v589
        %v596 = vsel %vm450, %v419, 0
        %v599 = vsel %vm450, %v420, 0
        %v602 = vsel %vm450, %v421, 0
        %v605 = vsel %vm450, %v422, 0
        %v608 = vsel %vm450, %v423, 0
        %v611 = vsel %vm450, %v424, 0
        %v614 = vsel %vm450, %v425, 0
        %v617 = vsel %vm450, %v426, 0
        %619 = vmatprep.subr.bf16.mxu0 0
        %620 = vmatpush1.bf16.msra.mxu0 0
        %621 = vmatprep.subr.bf16.mxu0 0
        %622 = vmatpush1.bf16.msra.mxu0 0
        %623 = vmatprep.subr.bf16.mxu0 0
        %624 = vmatpush1.bf16.msra.mxu0 0
        %625 = vmatprep.subr.bf16.mxu0 0
        %626 = vmatpush1.bf16.msra.mxu0 0
        %627 = vmatprep.subr.bf16.mxu0 0
        %628 = vmatpush1.bf16.msra.mxu0 0
        %629 = vmatprep.subr.bf16.mxu0 0
        %630 = vmatpush1.bf16.msra.mxu0 0
        %631 = vmatprep.subr.bf16.mxu0 0
        %632 = vmatpush1.bf16.msra.mxu0 %v592
        %633 = vmatprep.subr.bf16.mxu0 0
        %634 = vmatpush1.bf16.msra.mxu0 %v591
        %635 = vmatprep.subr.bf16.mxu0 0
        %636 = vmatpush2.bf16.msra.mxu0 0
        %637 = vmatprep.subr.bf16.mxu0 0
        %638 = vmatpush2.bf16.msra.mxu0 0
        %639 = vmatprep.subr.bf16.mxu0 0
        %640 = vmatpush2.bf16.msra.mxu0 0
        %641 = vmatprep.subr.bf16.mxu0 0
        %642 = vmatpush2.bf16.msra.mxu0 0
        %643 = vmatprep.subr.bf16.mxu0 0
        %644 = vmatpush2.bf16.msra.mxu0 0
        %645 = vmatprep.subr.bf16.mxu0 0
        %646 = vmatpush2.bf16.msra.mxu0 0
        %647 = vmatprep.subr.bf16.mxu0 0
        %648 = vmatpush2.bf16.msra.mxu0 0
        %649 = vmatprep.subr.bf16.mxu0 0
        %650 = vmatpush2.bf16.msra.mxu0 0
        %651 = vmatprep.mubr.bf16.mxu0 0
        %652 = vmatmul.mubr.bf16.gmra.mxu0 %v596
        %v653 = vpop.f32.mrf.mxu0
        %v654 = vadd.f32 %v581, %v653
        %v655 = vpop.f32.mrf.mxu0
        %v656 = vpop.f32.mrf.mxu0
        %v657 = vadd.f32 %v581, %v656
        %v658 = vpop.f32.mrf.mxu0
        %659 = vmatprep.mubr.bf16.mxu0 0
        %660 = vmatmul.mubr.bf16.gmra.mxu0 %v599
        %v661 = vpop.f32.mrf.mxu0
        %v662 = vadd.f32 %v581, %v661
        %v663 = vpop.f32.mrf.mxu0
        %v664 = vpop.f32.mrf.mxu0
        %v665 = vadd.f32 %v581, %v664
        %v666 = vpop.f32.mrf.mxu0
        %667 = vmatprep.mubr.bf16.mxu0 0
        %668 = vmatmul.mubr.bf16.gmra.mxu0 %v602
        %v669 = vpop.f32.mrf.mxu0
        %v670 = vadd.f32 %v581, %v669
        %v671 = vpop.f32.mrf.mxu0
        %v672 = vpop.f32.mrf.mxu0
        %v673 = vadd.f32 %v581, %v672
        %v674 = vpop.f32.mrf.mxu0
        %675 = vmatprep.mubr.bf16.mxu0 0
        %676 = vmatmul.mubr.bf16.gmra.mxu0 %v605
        %v677 = vpop.f32.mrf.mxu0
        %v678 = vadd.f32 %v581, %v677
        %v679 = vpop.f32.mrf.mxu0
        %v680 = vpop.f32.mrf.mxu0
        %v681 = vadd.f32 %v581, %v680
        %v682 = vpop.f32.mrf.mxu0
        %683 = vmatprep.mubr.bf16.mxu0 0
        %684 = vmatmul.mubr.bf16.gmra.mxu0 %v608
        %v685 = vpop.f32.mrf.mxu0
        %v686 = vadd.f32 %v581, %v685
        %v687 = vpop.f32.mrf.mxu0
        %v688 = vpop.f32.mrf.mxu0
        %v689 = vadd.f32 %v581, %v688
        %v690 = vpop.f32.mrf.mxu0
        %691 = vmatprep.mubr.bf16.mxu0 0
        %692 = vmatmul.mubr.bf16.gmra.mxu0 %v611
        %v693 = vpop.f32.mrf.mxu0
        %v694 = vadd.f32 %v581, %v693
        %v695 = vpop.f32.mrf.mxu0
        %v696 = vpop.f32.mrf.mxu0
        %v697 = vadd.f32 %v581, %v696
        %v698 = vpop.f32.mrf.mxu0
        %699 = vmatprep.mubr.bf16.mxu0 0
        %700 = vmatmul.mubr.bf16.gmra.mxu0 %v614
        %v701 = vpop.f32.mrf.mxu0
        %v702 = vadd.f32 %v581, %v701
        %v703 = vpop.f32.mrf.mxu0
        %v704 = vpop.f32.mrf.mxu0
        %v705 = vadd.f32 %v581, %v704
        %v706 = vpop.f32.mrf.mxu0
        %707 = vmatprep.mubr.bf16.mxu0 0
        %708 = vmatmul.mubr.bf16.gmra.mxu0 %v617
        %v709 = vpop.f32.mrf.mxu0
        %v710 = vadd.f32 %v581, %v709
        %v711 = vpop.f32.mrf.mxu0
        %v712 = vpop.f32.mrf.mxu0
        %v713 = vadd.f32 %v581, %v712
        %v714 = vpop.f32.mrf.mxu0
        %715 = vdwg.mxu0
        %v716 = vld [vmem:[%s6] sm:$0xf]
        %v717 = vld [vmem:[%s6 + $0x4] sm:$0xf]
        %v718 = vld [vmem:[%s6 + $0x8] sm:$0xf]
        %v719 = vld [vmem:[%s6 + $0xc] sm:$0xf]
        %v720 = vld [vmem:[%s7] sm:$0x1]
        %v722 = vlaneseq
        %v723 = vshrl.u32 %v722, 7
        %v724 = vsub.s32 0, %v723
        %v725 = vrot.slane %v720, %v724
        %v731 = vunpack.c.l.b16 %v716
        %v732 = vunpack.c.l.b16 %v717
        %v733 = vunpack.c.l.b16 %v718
        %v734 = vunpack.c.l.b16 %v719
        %v735 = vpack.c.b16 %v732, %v731
        %v736 = vpack.c.b16 %v734, %v733
        %739 = vmatprep.subr.bf16.mxu0 0
        %740 = vmatpush1.bf16.msra.mxu0 0
        %741 = vmatprep.subr.bf16.mxu0 0
        %742 = vmatpush1.bf16.msra.mxu0 0
        %743 = vmatprep.subr.bf16.mxu0 0
        %744 = vmatpush1.bf16.msra.mxu0 0
        %745 = vmatprep.subr.bf16.mxu0 0
        %746 = vmatpush1.bf16.msra.mxu0 0
        %747 = vmatprep.subr.bf16.mxu0 0
        %748 = vmatpush1.bf16.msra.mxu0 0
        %749 = vmatprep.subr.bf16.mxu0 0
        %750 = vmatpush1.bf16.msra.mxu0 0
        %751 = vmatprep.subr.bf16.mxu0 0
        %752 = vmatpush1.bf16.msra.mxu0 %v736
        %753 = vmatprep.subr.bf16.mxu0 0
        %754 = vmatpush1.bf16.msra.mxu0 %v735
        %755 = vmatprep.subr.bf16.mxu0 0
        %756 = vmatpush2.bf16.msra.mxu0 0
        %757 = vmatprep.subr.bf16.mxu0 0
        %758 = vmatpush2.bf16.msra.mxu0 0
        %759 = vmatprep.subr.bf16.mxu0 0
        %760 = vmatpush2.bf16.msra.mxu0 0
        %761 = vmatprep.subr.bf16.mxu0 0
        %762 = vmatpush2.bf16.msra.mxu0 0
        %763 = vmatprep.subr.bf16.mxu0 0
        %764 = vmatpush2.bf16.msra.mxu0 0
        %765 = vmatprep.subr.bf16.mxu0 0
        %766 = vmatpush2.bf16.msra.mxu0 0
        %767 = vmatprep.subr.bf16.mxu0 0
        %768 = vmatpush2.bf16.msra.mxu0 0
        %769 = vmatprep.subr.bf16.mxu0 0
        %770 = vmatpush2.bf16.msra.mxu0 0
        %771 = vmatprep.mubr.bf16.mxu0 0
        %772 = vmatmul.mubr.bf16.gmra.mxu0 %v596
        %v773 = vpop.f32.mrf.mxu0
        %v774 = vadd.f32 %v725, %v773
        %v775 = vpop.f32.mrf.mxu0
        %v776 = vpop.f32.mrf.mxu0
        %v777 = vadd.f32 %v725, %v776
        %v778 = vpop.f32.mrf.mxu0
        %779 = vmatprep.mubr.bf16.mxu0 0
        %780 = vmatmul.mubr.bf16.gmra.mxu0 %v599
        %v781 = vpop.f32.mrf.mxu0
        %v782 = vadd.f32 %v725, %v781
        %v783 = vpop.f32.mrf.mxu0
        %v784 = vpop.f32.mrf.mxu0
        %v785 = vadd.f32 %v725, %v784
        %v786 = vpop.f32.mrf.mxu0
        %787 = vmatprep.mubr.bf16.mxu0 0
        %788 = vmatmul.mubr.bf16.gmra.mxu0 %v602
        %v789 = vpop.f32.mrf.mxu0
        %v790 = vadd.f32 %v725, %v789
        %v791 = vpop.f32.mrf.mxu0
        %v792 = vpop.f32.mrf.mxu0
        %v793 = vadd.f32 %v725, %v792
        %v794 = vpop.f32.mrf.mxu0
        %795 = vmatprep.mubr.bf16.mxu0 0
        %796 = vmatmul.mubr.bf16.gmra.mxu0 %v605
        %v797 = vpop.f32.mrf.mxu0
        %v798 = vadd.f32 %v725, %v797
        %v799 = vpop.f32.mrf.mxu0
        %v800 = vpop.f32.mrf.mxu0
        %v801 = vadd.f32 %v725, %v800
        %v802 = vpop.f32.mrf.mxu0
        %803 = vmatprep.mubr.bf16.mxu0 0
        %804 = vmatmul.mubr.bf16.gmra.mxu0 %v608
        %v805 = vpop.f32.mrf.mxu0
        %v806 = vadd.f32 %v725, %v805
        %v807 = vpop.f32.mrf.mxu0
        %v808 = vpop.f32.mrf.mxu0
        %v809 = vadd.f32 %v725, %v808
        %v810 = vpop.f32.mrf.mxu0
        %811 = vmatprep.mubr.bf16.mxu0 0
        %812 = vmatmul.mubr.bf16.gmra.mxu0 %v611
        %v813 = vpop.f32.mrf.mxu0
        %v814 = vadd.f32 %v725, %v813
        %v815 = vpop.f32.mrf.mxu0
        %v816 = vpop.f32.mrf.mxu0
        %v817 = vadd.f32 %v725, %v816
        %v818 = vpop.f32.mrf.mxu0
        %819 = vmatprep.mubr.bf16.mxu0 0
        %820 = vmatmul.mubr.bf16.gmra.mxu0 %v614
        %v821 = vpop.f32.mrf.mxu0
        %v822 = vadd.f32 %v725, %v821
        %v823 = vpop.f32.mrf.mxu0
        %v824 = vpop.f32.mrf.mxu0
        %v825 = vadd.f32 %v725, %v824
        %v826 = vpop.f32.mrf.mxu0
        %827 = vmatprep.mubr.bf16.mxu0 0
        %828 = vmatmul.mubr.bf16.gmra.mxu0 %v617
        %v829 = vpop.f32.mrf.mxu0
        %v830 = vadd.f32 %v725, %v829
        %v831 = vpop.f32.mrf.mxu0
        %v832 = vpop.f32.mrf.mxu0
        %v833 = vadd.f32 %v725, %v832
        %v834 = vpop.f32.mrf.mxu0
        %835 = vdwg.mxu0
        %v836 = vpack.c.bf16 %v513, %v510
        %v837 = vpack.c.bf16 %v521, %v518
        %v838 = vpack.c.bf16 %v529, %v526
        %v839 = vpack.c.bf16 %v537, %v534
        %v840 = vpack.c.bf16 %v545, %v542
        %v841 = vpack.c.bf16 %v553, %v550
        %v842 = vpack.c.bf16 %v561, %v558
        %v843 = vpack.c.bf16 %v569, %v566
        %v844 = vpack.c.bf16 %v657, %v654
        %v845 = vpack.c.bf16 %v665, %v662
        %v846 = vpack.c.bf16 %v673, %v670
        %v847 = vpack.c.bf16 %v681, %v678
        %v848 = vpack.c.bf16 %v689, %v686
        %v849 = vpack.c.bf16 %v697, %v694
        %v850 = vpack.c.bf16 %v705, %v702
        %v851 = vpack.c.bf16 %v713, %v710
        %v853 = vsel %vm450, %v836, 0
        %v856 = vsel %vm450, %v837, 0
        %v859 = vsel %vm450, %v838, 0
        %v862 = vsel %vm450, %v839, 0
        %v865 = vsel %vm450, %v840, 0
        %v868 = vsel %vm450, %v841, 0
        %v871 = vsel %vm450, %v842, 0
        %v874 = vsel %vm450, %v843, 0
        %v877 = vsel %vm450, %v844, 0
        %v880 = vsel %vm450, %v845, 0
        %v883 = vsel %vm450, %v846, 0
        %v886 = vsel %vm450, %v847, 0
        %v889 = vsel %vm450, %v848, 0
        %v892 = vsel %vm450, %v849, 0
        %v895 = vsel %vm450, %v850, 0
        %v898 = vsel %vm450, %v851, 0
        %900 = vmatprep.subr.bf16.mxu0 0
        %901 = vmatpush1.bf16.xpose.msra.mxu0 %v898
        %902 = vmatprep.subr.bf16.mxu0 0
        %903 = vmatpush1.bf16.xpose.msra.mxu0 %v895
        %904 = vmatprep.subr.bf16.mxu0 0
        %905 = vmatpush1.bf16.xpose.msra.mxu0 %v892
        %906 = vmatprep.subr.bf16.mxu0 0
        %907 = vmatpush1.bf16.xpose.msra.mxu0 %v889
        %908 = vmatprep.subr.bf16.mxu0 0
        %909 = vmatpush1.bf16.xpose.msra.mxu0 %v886
        %910 = vmatprep.subr.bf16.mxu0 0
        %911 = vmatpush1.bf16.xpose.msra.mxu0 %v883
        %912 = vmatprep.subr.bf16.mxu0 0
        %913 = vmatpush1.bf16.xpose.msra.mxu0 %v880
        %914 = vmatprep.subr.bf16.mxu0 0
        %915 = vmatpush1.bf16.xpose.msra.mxu0 %v877
        %916 = vmatprep.subr.bf16.mxu0 0
        %917 = vmatpush2.bf16.xpose.msra.mxu0 0
        %918 = vmatprep.subr.bf16.mxu0 0
        %919 = vmatpush2.bf16.xpose.msra.mxu0 0
        %920 = vmatprep.subr.bf16.mxu0 0
        %921 = vmatpush2.bf16.xpose.msra.mxu0 0
        %922 = vmatprep.subr.bf16.mxu0 0
        %923 = vmatpush2.bf16.xpose.msra.mxu0 0
        %924 = vmatprep.subr.bf16.mxu0 0
        %925 = vmatpush2.bf16.xpose.msra.mxu0 0
        %926 = vmatprep.subr.bf16.mxu0 0
        %927 = vmatpush2.bf16.xpose.msra.mxu0 0
        %928 = vmatprep.subr.bf16.mxu0 0
        %929 = vmatpush2.bf16.xpose.msra.mxu0 0
        %930 = vmatprep.subr.bf16.mxu0 0
        %931 = vmatpush2.bf16.xpose.msra.mxu0 0
        %932 = vmatprep.mubr.bf16.mxu0 0
        %933 = vmatmul.mubr.bf16.gmra.mxu0 %v853
        %v934 = vpop.f32.mrf.mxu0
        %v935 = vadd.f32 0.0, %v934
        %v936 = vpop.f32.mrf.mxu0
        %v937 = vpop.f32.mrf.mxu0
        %v938 = vadd.f32 0.0, %v937
        %v939 = vpop.f32.mrf.mxu0
        %940 = vmatprep.mubr.bf16.mxu0 0
        %941 = vmatmul.mubr.bf16.gmra.mxu0 %v856
        %v942 = vpop.f32.mrf.mxu0
        %v943 = vadd.f32 0.0, %v942
        %v944 = vpop.f32.mrf.mxu0
        %v945 = vpop.f32.mrf.mxu0
        %v946 = vadd.f32 0.0, %v945
        %v947 = vpop.f32.mrf.mxu0
        %948 = vmatprep.mubr.bf16.mxu0 0
        %949 = vmatmul.mubr.bf16.gmra.mxu0 %v859
        %v950 = vpop.f32.mrf.mxu0
        %v951 = vadd.f32 0.0, %v950
        %v952 = vpop.f32.mrf.mxu0
        %v953 = vpop.f32.mrf.mxu0
        %v954 = vadd.f32 0.0, %v953
        %v955 = vpop.f32.mrf.mxu0
        %956 = vmatprep.mubr.bf16.mxu0 0
        %957 = vmatmul.mubr.bf16.gmra.mxu0 %v862
        %v958 = vpop.f32.mrf.mxu0
        %v959 = vadd.f32 0.0, %v958
        %v960 = vpop.f32.mrf.mxu0
        %v961 = vpop.f32.mrf.mxu0
        %v962 = vadd.f32 0.0, %v961
        %v963 = vpop.f32.mrf.mxu0
        %964 = vmatprep.mubr.bf16.mxu0 0
        %965 = vmatmul.mubr.bf16.gmra.mxu0 %v865
        %v966 = vpop.f32.mrf.mxu0
        %v967 = vadd.f32 0.0, %v966
        %v968 = vpop.f32.mrf.mxu0
        %v969 = vpop.f32.mrf.mxu0
        %v970 = vadd.f32 0.0, %v969
        %v971 = vpop.f32.mrf.mxu0
        %972 = vmatprep.mubr.bf16.mxu0 0
        %973 = vmatmul.mubr.bf16.gmra.mxu0 %v868
        %v974 = vpop.f32.mrf.mxu0
        %v975 = vadd.f32 0.0, %v974
        %v976 = vpop.f32.mrf.mxu0
        %v977 = vpop.f32.mrf.mxu0
        %v978 = vadd.f32 0.0, %v977
        %v979 = vpop.f32.mrf.mxu0
        %980 = vmatprep.mubr.bf16.mxu0 0
        %981 = vmatmul.mubr.bf16.gmra.mxu0 %v871
        %v982 = vpop.f32.mrf.mxu0
        %v983 = vadd.f32 0.0, %v982
        %v984 = vpop.f32.mrf.mxu0
        %v985 = vpop.f32.mrf.mxu0
        %v986 = vadd.f32 0.0, %v985
        %v987 = vpop.f32.mrf.mxu0
        %988 = vmatprep.mubr.bf16.mxu0 0
        %989 = vmatmul.mubr.bf16.gmra.mxu0 %v874
        %v990 = vpop.f32.mrf.mxu0
        %v991 = vadd.f32 0.0, %v990
        %v992 = vpop.f32.mrf.mxu0
        %v993 = vpop.f32.mrf.mxu0
        %v994 = vadd.f32 0.0, %v993
        %v995 = vpop.f32.mrf.mxu0
        %996 = vdwg.mxu0
        %997 = vmax.xlane.f32.xlu0 %v935
        %v998 = vpop.xlane.xlu0 %997
        %999 = vmax.xlane.f32.xlu0 %v938
        %v1000 = vpop.xlane.xlu0 %999
        %1001 = vmax.xlane.f32.xlu0 %v943
        %v1002 = vpop.xlane.xlu0 %1001
        %1003 = vmax.xlane.f32.xlu0 %v946
        %v1004 = vpop.xlane.xlu0 %1003
        %1005 = vmax.xlane.f32.xlu0 %v951
        %v1006 = vpop.xlane.xlu0 %1005
        %1007 = vmax.xlane.f32.xlu0 %v954
        %v1008 = vpop.xlane.xlu0 %1007
        %1009 = vmax.xlane.f32.xlu0 %v959
        %v1010 = vpop.xlane.xlu0 %1009
        %1011 = vmax.xlane.f32.xlu0 %v962
        %v1012 = vpop.xlane.xlu0 %1011
        %1013 = vmax.xlane.f32.xlu0 %v967
        %v1014 = vpop.xlane.xlu0 %1013
        %1015 = vmax.xlane.f32.xlu0 %v970
        %v1016 = vpop.xlane.xlu0 %1015
        %1017 = vmax.xlane.f32.xlu0 %v975
        %v1018 = vpop.xlane.xlu0 %1017
        %1019 = vmax.xlane.f32.xlu0 %v978
        %v1020 = vpop.xlane.xlu0 %1019
        %1021 = vmax.xlane.f32.xlu0 %v983
        %v1022 = vpop.xlane.xlu0 %1021
        %1023 = vmax.xlane.f32.xlu0 %v986
        %v1024 = vpop.xlane.xlu0 %1023
        %1025 = vmax.xlane.f32.xlu0 %v991
        %v1026 = vpop.xlane.xlu0 %1025
        %1027 = vmax.xlane.f32.xlu0 %v994
        %v1028 = vpop.xlane.xlu0 %1027
        %v1029 = vsub.f32 %v935, %v998
        %v1030 = vsub.f32 %v938, %v1000
        %v1031 = vsub.f32 %v943, %v1002
        %v1032 = vsub.f32 %v946, %v1004
        %v1033 = vsub.f32 %v951, %v1006
        %v1034 = vsub.f32 %v954, %v1008
        %v1035 = vsub.f32 %v959, %v1010
        %v1036 = vsub.f32 %v962, %v1012
        %v1037 = vsub.f32 %v967, %v1014
        %v1038 = vsub.f32 %v970, %v1016
        %v1039 = vsub.f32 %v975, %v1018
        %v1040 = vsub.f32 %v978, %v1020
        %v1041 = vsub.f32 %v983, %v1022
        %v1042 = vsub.f32 %v986, %v1024
        %v1043 = vsub.f32 %v991, %v1026
        %v1044 = vsub.f32 %v994, %v1028
        %v1045 = vmul.f32 %v1029, 1.442695
        %v1046 = vpow.pop %v1045
        %v1047 = vmul.f32 %v1030, 1.442695
        %v1048 = vpow.pop %v1047
        %v1049 = vmul.f32 %v1031, 1.442695
        %v1050 = vpow.pop %v1049
        %v1051 = vmul.f32 %v1032, 1.442695
        %v1052 = vpow.pop %v1051
        %v1053 = vmul.f32 %v1033, 1.442695
        %v1054 = vpow.pop %v1053
        %v1055 = vmul.f32 %v1034, 1.442695
        %v1056 = vpow.pop %v1055
        %v1057 = vmul.f32 %v1035, 1.442695
        %v1058 = vpow.pop %v1057
        %v1059 = vmul.f32 %v1036, 1.442695
        %v1060 = vpow.pop %v1059
        %v1061 = vmul.f32 %v1037, 1.442695
        %v1062 = vpow.pop %v1061
        %v1063 = vmul.f32 %v1038, 1.442695
        %v1064 = vpow.pop %v1063
        %v1065 = vmul.f32 %v1039, 1.442695
        %v1066 = vpow.pop %v1065
        %v1067 = vmul.f32 %v1040, 1.442695
        %v1068 = vpow.pop %v1067
        %v1069 = vmul.f32 %v1041, 1.442695
        %v1070 = vpow.pop %v1069
        %v1071 = vmul.f32 %v1042, 1.442695
        %v1072 = vpow.pop %v1071
        %v1073 = vmul.f32 %v1043, 1.442695
        %v1074 = vpow.pop %v1073
        %v1075 = vmul.f32 %v1044, 1.442695
        %v1076 = vpow.pop %v1075
        %1077 = vadd.xlane.f32.xlu0 %v1046
        %v1078 = vpop.xlane.xlu0 %1077
        %1079 = vadd.xlane.f32.xlu0 %v1048
        %v1080 = vpop.xlane.xlu0 %1079
        %1081 = vadd.xlane.f32.xlu0 %v1050
        %v1082 = vpop.xlane.xlu0 %1081
        %1083 = vadd.xlane.f32.xlu0 %v1052
        %v1084 = vpop.xlane.xlu0 %1083
        %1085 = vadd.xlane.f32.xlu0 %v1054
        %v1086 = vpop.xlane.xlu0 %1085
        %1087 = vadd.xlane.f32.xlu0 %v1056
        %v1088 = vpop.xlane.xlu0 %1087
        %1089 = vadd.xlane.f32.xlu0 %v1058
        %v1090 = vpop.xlane.xlu0 %1089
        %1091 = vadd.xlane.f32.xlu0 %v1060
        %v1092 = vpop.xlane.xlu0 %1091
        %1093 = vadd.xlane.f32.xlu0 %v1062
        %v1094 = vpop.xlane.xlu0 %1093
        %1095 = vadd.xlane.f32.xlu0 %v1064
        %v1096 = vpop.xlane.xlu0 %1095
        %1097 = vadd.xlane.f32.xlu0 %v1066
        %v1098 = vpop.xlane.xlu0 %1097
        %1099 = vadd.xlane.f32.xlu0 %v1068
        %v1100 = vpop.xlane.xlu0 %1099
        %1101 = vadd.xlane.f32.xlu0 %v1070
        %v1102 = vpop.xlane.xlu0 %1101
        %1103 = vadd.xlane.f32.xlu0 %v1072
        %v1104 = vpop.xlane.xlu0 %1103
        %1105 = vadd.xlane.f32.xlu0 %v1074
        %v1106 = vpop.xlane.xlu0 %1105
        %1107 = vadd.xlane.f32.xlu0 %v1076
        %v1108 = vpop.xlane.xlu0 %1107
        %v1109 = vrcp.pop %v1078
        %v1110 = vmul.f32 %v1046, %v1109
        %v1111 = vrcp.pop %v1080
        %v1112 = vmul.f32 %v1048, %v1111
        %v1113 = vrcp.pop %v1082
        %v1114 = vmul.f32 %v1050, %v1113
        %v1115 = vrcp.pop %v1084
        %v1116 = vmul.f32 %v1052, %v1115
        %v1117 = vrcp.pop %v1086
        %v1118 = vmul.f32 %v1054, %v1117
        %v1119 = vrcp.pop %v1088
        %v1120 = vmul.f32 %v1056, %v1119
        %v1121 = vrcp.pop %v1090
        %v1122 = vmul.f32 %v1058, %v1121
        %v1123 = vrcp.pop %v1092
        %v1124 = vmul.f32 %v1060, %v1123
        %v1125 = vrcp.pop %v1094
        %v1126 = vmul.f32 %v1062, %v1125
        %v1127 = vrcp.pop %v1096
        %v1128 = vmul.f32 %v1064, %v1127
        %v1129 = vrcp.pop %v1098
        %v1130 = vmul.f32 %v1066, %v1129
        %v1131 = vrcp.pop %v1100
        %v1132 = vmul.f32 %v1068, %v1131
        %v1133 = vrcp.pop %v1102
        %v1134 = vmul.f32 %v1070, %v1133
        %v1135 = vrcp.pop %v1104
        %v1136 = vmul.f32 %v1072, %v1135
        %v1137 = vrcp.pop %v1106
        %v1138 = vmul.f32 %v1074, %v1137
        %v1139 = vrcp.pop %v1108
        %v1140 = vmul.f32 %v1076, %v1139
        %v1141 = vpack.c.bf16 %v1112, %v1110
        %v1142 = vpack.c.bf16 %v1116, %v1114
        %v1143 = vpack.c.bf16 %v1120, %v1118
        %v1144 = vpack.c.bf16 %v1124, %v1122
        %v1145 = vpack.c.bf16 %v1128, %v1126
        %v1146 = vpack.c.bf16 %v1132, %v1130
        %v1147 = vpack.c.bf16 %v1136, %v1134
        %v1148 = vpack.c.bf16 %v1140, %v1138
        %v1149 = vpack.c.bf16 %v777, %v774
        %v1150 = vpack.c.bf16 %v785, %v782
        %v1151 = vpack.c.bf16 %v793, %v790
        %v1152 = vpack.c.bf16 %v801, %v798
        %v1153 = vpack.c.bf16 %v809, %v806
        %v1154 = vpack.c.bf16 %v817, %v814
        %v1155 = vpack.c.bf16 %v825, %v822
        %v1156 = vpack.c.bf16 %v833, %v830
        %1157 = vmatprep.subr.bf16.mxu0 0
        %1158 = vmatpush1.bf16.msra.mxu0 %v1156
        %1159 = vmatprep.subr.bf16.mxu0 0
        %1160 = vmatpush1.bf16.msra.mxu0 %v1155
        %1161 = vmatprep.subr.bf16.mxu0 0
        %1162 = vmatpush1.bf16.msra.mxu0 %v1154
        %1163 = vmatprep.subr.bf16.mxu0 0
        %1164 = vmatpush1.bf16.msra.mxu0 %v1153
        %1165 = vmatprep.subr.bf16.mxu0 0
        %1166 = vmatpush1.bf16.msra.mxu0 %v1152
        %1167 = vmatprep.subr.bf16.mxu0 0
        %1168 = vmatpush1.bf16.msra.mxu0 %v1151
        %1169 = vmatprep.subr.bf16.mxu0 0
        %1170 = vmatpush1.bf16.msra.mxu0 %v1150
        %1171 = vmatprep.subr.bf16.mxu0 0
        %1172 = vmatpush1.bf16.msra.mxu0 %v1149
        %1173 = vmatprep.subr.bf16.mxu0 0
        %1174 = vmatpush2.bf16.msra.mxu0 0
        %1175 = vmatprep.subr.bf16.mxu0 0
        %1176 = vmatpush2.bf16.msra.mxu0 0
        %1177 = vmatprep.subr.bf16.mxu0 0
        %1178 = vmatpush2.bf16.msra.mxu0 0
        %1179 = vmatprep.subr.bf16.mxu0 0
        %1180 = vmatpush2.bf16.msra.mxu0 0
        %1181 = vmatprep.subr.bf16.mxu0 0
        %1182 = vmatpush2.bf16.msra.mxu0 0
        %1183 = vmatprep.subr.bf16.mxu0 0
        %1184 = vmatpush2.bf16.msra.mxu0 0
        %1185 = vmatprep.subr.bf16.mxu0 0
        %1186 = vmatpush2.bf16.msra.mxu0 0
        %1187 = vmatprep.subr.bf16.mxu0 0
        %1188 = vmatpush2.bf16.msra.mxu0 0
        %1189 = vmatprep.mubr.bf16.mxu0 0
        %1190 = vmatmul.mubr.bf16.gmra.mxu0 %v1141
        %v1191 = vpop.f32.mrf.mxu0
        %v1192 = vadd.f32 0.0, %v1191
        %v1193 = vpop.f32.mrf.mxu0
        %v1194 = vpop.f32.mrf.mxu0
        %v1195 = vadd.f32 0.0, %v1194
        %v1196 = vpop.f32.mrf.mxu0
        %1197 = vmatprep.mubr.bf16.mxu0 0
        %1198 = vmatmul.mubr.bf16.gmra.mxu0 %v1142
        %v1199 = vpop.f32.mrf.mxu0
        %v1200 = vadd.f32 0.0, %v1199
        %v1201 = vpop.f32.mrf.mxu0
        %v1202 = vpop.f32.mrf.mxu0
        %v1203 = vadd.f32 0.0, %v1202
        %v1204 = vpop.f32.mrf.mxu0
        %1205 = vmatprep.mubr.bf16.mxu0 0
        %1206 = vmatmul.mubr.bf16.gmra.mxu0 %v1143
        %v1207 = vpop.f32.mrf.mxu0
        %v1208 = vadd.f32 0.0, %v1207
        %v1209 = vpop.f32.mrf.mxu0
        %v1210 = vpop.f32.mrf.mxu0
        %v1211 = vadd.f32 0.0, %v1210
        %v1212 = vpop.f32.mrf.mxu0
        %1213 = vmatprep.mubr.bf16.mxu0 0
        %1214 = vmatmul.mubr.bf16.gmra.mxu0 %v1144
        %v1215 = vpop.f32.mrf.mxu0
        %v1216 = vadd.f32 0.0, %v1215
        %v1217 = vpop.f32.mrf.mxu0
        %v1218 = vpop.f32.mrf.mxu0
        %v1219 = vadd.f32 0.0, %v1218
        %v1220 = vpop.f32.mrf.mxu0
        %1221 = vmatprep.mubr.bf16.mxu0 0
        %1222 = vmatmul.mubr.bf16.gmra.mxu0 %v1145
        %v1223 = vpop.f32.mrf.mxu0
        %v1224 = vadd.f32 0.0, %v1223
        %v1225 = vpop.f32.mrf.mxu0
        %v1226 = vpop.f32.mrf.mxu0
        %v1227 = vadd.f32 0.0, %v1226
        %v1228 = vpop.f32.mrf.mxu0
        %1229 = vmatprep.mubr.bf16.mxu0 0
        %1230 = vmatmul.mubr.bf16.gmra.mxu0 %v1146
        %v1231 = vpop.f32.mrf.mxu0
        %v1232 = vadd.f32 0.0, %v1231
        %v1233 = vpop.f32.mrf.mxu0
        %v1234 = vpop.f32.mrf.mxu0
        %v1235 = vadd.f32 0.0, %v1234
        %v1236 = vpop.f32.mrf.mxu0
        %1237 = vmatprep.mubr.bf16.mxu0 0
        %1238 = vmatmul.mubr.bf16.gmra.mxu0 %v1147
        %v1239 = vpop.f32.mrf.mxu0
        %v1240 = vadd.f32 0.0, %v1239
        %v1241 = vpop.f32.mrf.mxu0
        %v1242 = vpop.f32.mrf.mxu0
        %v1243 = vadd.f32 0.0, %v1242
        %v1244 = vpop.f32.mrf.mxu0
        %1245 = vmatprep.mubr.bf16.mxu0 0
        %1246 = vmatmul.mubr.bf16.gmra.mxu0 %v1148
        %v1247 = vpop.f32.mrf.mxu0
        %v1248 = vadd.f32 0.0, %v1247
        %v1249 = vpop.f32.mrf.mxu0
        %v1250 = vpop.f32.mrf.mxu0
        %v1251 = vadd.f32 0.0, %v1250
        %v1252 = vpop.f32.mrf.mxu0
        %1253 = vdwg.mxu0
        %v1254 = vpack.c.bf16 %v1195, %v1192
        %v1255 = vpack.c.bf16 %v1203, %v1200
        %v1256 = vpack.c.bf16 %v1211, %v1208
        %v1257 = vpack.c.bf16 %v1219, %v1216
        %v1258 = vpack.c.bf16 %v1227, %v1224
        %v1259 = vpack.c.bf16 %v1235, %v1232
        %v1260 = vpack.c.bf16 %v1243, %v1240
        %v1261 = vpack.c.bf16 %v1251, %v1248
        %v1262 = vld [vmem:[%s8] sm:$0xf]
        %v1263 = vld [vmem:[%s8 + $0x4] sm:$0xf]
        %v1264 = vld [vmem:[%s8 + $0x8] sm:$0xf]
        %v1265 = vld [vmem:[%s8 + $0xc] sm:$0xf]
        %v1266 = vld [vmem:[%s9] sm:$0x1]
        %v1268 = vlaneseq
        %v1269 = vshrl.u32 %v1268, 7
        %v1270 = vsub.s32 0, %v1269
        %v1271 = vrot.slane %v1266, %v1270
        %v1277 = vunpack.c.l.b16 %v1262
        %v1278 = vunpack.c.l.b16 %v1263
        %v1279 = vunpack.c.l.b16 %v1264
        %v1280 = vunpack.c.l.b16 %v1265
        %v1281 = vpack.c.b16 %v1278, %v1277
        %v1282 = vpack.c.b16 %v1280, %v1279
        %v1286 = vsel %vm450, %v1254, 0
        %v1289 = vsel %vm450, %v1255, 0
        %v1292 = vsel %vm450, %v1256, 0
        %v1295 = vsel %vm450, %v1257, 0
        %v1298 = vsel %vm450, %v1258, 0
        %v1301 = vsel %vm450, %v1259, 0
        %v1304 = vsel %vm450, %v1260, 0
        %v1307 = vsel %vm450, %v1261, 0
        %1309 = vmatprep.subr.bf16.mxu0 0
        %1310 = vmatpush1.bf16.msra.mxu0 0
        %1311 = vmatprep.subr.bf16.mxu0 0
        %1312 = vmatpush1.bf16.msra.mxu0 0
        %1313 = vmatprep.subr.bf16.mxu0 0
        %1314 = vmatpush1.bf16.msra.mxu0 0
        %1315 = vmatprep.subr.bf16.mxu0 0
        %1316 = vmatpush1.bf16.msra.mxu0 0
        %1317 = vmatprep.subr.bf16.mxu0 0
        %1318 = vmatpush1.bf16.msra.mxu0 0
        %1319 = vmatprep.subr.bf16.mxu0 0
        %1320 = vmatpush1.bf16.msra.mxu0 0
        %1321 = vmatprep.subr.bf16.mxu0 0
        %1322 = vmatpush1.bf16.msra.mxu0 %v1282
        %1323 = vmatprep.subr.bf16.mxu0 0
        %1324 = vmatpush1.bf16.msra.mxu0 %v1281
        %1325 = vmatprep.subr.bf16.mxu0 0
        %1326 = vmatpush2.bf16.msra.mxu0 0
        %1327 = vmatprep.subr.bf16.mxu0 0
        %1328 = vmatpush2.bf16.msra.mxu0 0
        %1329 = vmatprep.subr.bf16.mxu0 0
        %1330 = vmatpush2.bf16.msra.mxu0 0
        %1331 = vmatprep.subr.bf16.mxu0 0
        %1332 = vmatpush2.bf16.msra.mxu0 0
        %1333 = vmatprep.subr.bf16.mxu0 0
        %1334 = vmatpush2.bf16.msra.mxu0 0
        %1335 = vmatprep.subr.bf16.mxu0 0
        %1336 = vmatpush2.bf16.msra.mxu0 0
        %1337 = vmatprep.subr.bf16.mxu0 0
        %1338 = vmatpush2.bf16.msra.mxu0 0
        %1339 = vmatprep.subr.bf16.mxu0 0
        %1340 = vmatpush2.bf16.msra.mxu0 0
        %1341 = vmatprep.mubr.bf16.mxu0 0
        %1342 = vmatmul.mubr.bf16.gmra.mxu0 %v1286
        %v1343 = vpop.f32.mrf.mxu0
        %v1344 = vadd.f32 %v1271, %v1343
        %v1345 = vpop.f32.mrf.mxu0
        %v1346 = vpop.f32.mrf.mxu0
        %v1347 = vadd.f32 %v1271, %v1346
        %v1348 = vpop.f32.mrf.mxu0
        %1349 = vmatprep.mubr.bf16.mxu0 0
        %1350 = vmatmul.mubr.bf16.gmra.mxu0 %v1289
        %v1351 = vpop.f32.mrf.mxu0
        %v1352 = vadd.f32 %v1271, %v1351
        %v1353 = vpop.f32.mrf.mxu0
        %v1354 = vpop.f32.mrf.mxu0
        %v1355 = vadd.f32 %v1271, %v1354
        %v1356 = vpop.f32.mrf.mxu0
        %1357 = vmatprep.mubr.bf16.mxu0 0
        %1358 = vmatmul.mubr.bf16.gmra.mxu0 %v1292
        %v1359 = vpop.f32.mrf.mxu0
        %v1360 = vadd.f32 %v1271, %v1359
        %v1361 = vpop.f32.mrf.mxu0
        %v1362 = vpop.f32.mrf.mxu0
        %v1363 = vadd.f32 %v1271, %v1362
        %v1364 = vpop.f32.mrf.mxu0
        %1365 = vmatprep.mubr.bf16.mxu0 0
        %1366 = vmatmul.mubr.bf16.gmra.mxu0 %v1295
        %v1367 = vpop.f32.mrf.mxu0
        %v1368 = vadd.f32 %v1271, %v1367
        %v1369 = vpop.f32.mrf.mxu0
        %v1370 = vpop.f32.mrf.mxu0
        %v1371 = vadd.f32 %v1271, %v1370
        %v1372 = vpop.f32.mrf.mxu0
        %1373 = vmatprep.mubr.bf16.mxu0 0
        %1374 = vmatmul.mubr.bf16.gmra.mxu0 %v1298
        %v1375 = vpop.f32.mrf.mxu0
        %v1376 = vadd.f32 %v1271, %v1375
        %v1377 = vpop.f32.mrf.mxu0
        %v1378 = vpop.f32.mrf.mxu0
        %v1379 = vadd.f32 %v1271, %v1378
        %v1380 = vpop.f32.mrf.mxu0
        %1381 = vmatprep.mubr.bf16.mxu0 0
        %1382 = vmatmul.mubr.bf16.gmra.mxu0 %v1301
        %v1383 = vpop.f32.mrf.mxu0
        %v1384 = vadd.f32 %v1271, %v1383
        %v1385 = vpop.f32.mrf.mxu0
        %v1386 = vpop.f32.mrf.mxu0
        %v1387 = vadd.f32 %v1271, %v1386
        %v1388 = vpop.f32.mrf.mxu0
        %1389 = vmatprep.mubr.bf16.mxu0 0
        %1390 = vmatmul.mubr.bf16.gmra.mxu0 %v1304
        %v1391 = vpop.f32.mrf.mxu0
        %v1392 = vadd.f32 %v1271, %v1391
        %v1393 = vpop.f32.mrf.mxu0
        %v1394 = vpop.f32.mrf.mxu0
        %v1395 = vadd.f32 %v1271, %v1394
        %v1396 = vpop.f32.mrf.mxu0
        %1397 = vmatprep.mubr.bf16.mxu0 0
        %1398 = vmatmul.mubr.bf16.gmra.mxu0 %v1307
        %v1399 = vpop.f32.mrf.mxu0
        %v1400 = vadd.f32 %v1271, %v1399
        %v1401 = vpop.f32.mrf.mxu0
        %v1402 = vpop.f32.mrf.mxu0
        %v1403 = vadd.f32 %v1271, %v1402
        %v1404 = vpop.f32.mrf.mxu0
        %1405 = vdwg.mxu0
        %v1406 = vadd.f32 %v1344, %v379
        %v1407 = vadd.f32 %v1347, %v380
        %v1408 = vadd.f32 %v1352, %v381
        %v1409 = vadd.f32 %v1355, %v382
        %v1410 = vadd.f32 %v1360, %v383
        %v1411 = vadd.f32 %v1363, %v384
        %v1412 = vadd.f32 %v1368, %v385
        %v1413 = vadd.f32 %v1371, %v386
        %v1414 = vadd.f32 %v1376, %v387
        %v1415 = vadd.f32 %v1379, %v388
        %v1416 = vadd.f32 %v1384, %v389
        %v1417 = vadd.f32 %v1387, %v390
        %v1418 = vadd.f32 %v1392, %v391
        %v1419 = vadd.f32 %v1395, %v392
        %v1420 = vadd.f32 %v1400, %v393
        %v1421 = vadd.f32 %v1403, %v394
        %1422 = vxpose.xlu0.b32.start [1/16] %v1406, 128
        %1423 = vxpose.xlu0.b32.cont [2/16] %v1407, 128
        %1424 = vxpose.xlu0.b32.cont [3/16] %v1408, 128
        %1425 = vxpose.xlu0.b32.cont [4/16] %v1409, 128
        %1426 = vxpose.xlu0.b32.cont [5/16] %v1410, 128
        %1427 = vxpose.xlu0.b32.cont [6/16] %v1411, 128
        %1428 = vxpose.xlu0.b32.cont [7/16] %v1412, 128
        %1429 = vxpose.xlu0.b32.cont [8/16] %v1413, 128
        %1430 = vxpose.xlu0.b32.cont [9/16] %v1414, 128
        %1431 = vxpose.xlu0.b32.cont [10/16] %v1415, 128
        %1432 = vxpose.xlu0.b32.cont [11/16] %v1416, 128
        %1433 = vxpose.xlu0.b32.cont [12/16] %v1417, 128
        %1434 = vxpose.xlu0.b32.cont [13/16] %v1418, 128
        %1435 = vxpose.xlu0.b32.cont [14/16] %v1419, 128
        %1436 = vxpose.xlu0.b32.cont [15/16] %v1420, 128
        %1437 = vxpose.xlu0.b32.end [16/16] %v1421, 128
        %v1438 = vpop.trf.xlu0
        %v1439 = vpop.trf.xlu0
        %v1440 = vpop.trf.xlu0
        %v1441 = vpop.trf.xlu0
        %v1442 = vpop.trf.xlu0
        %v1443 = vpop.trf.xlu0
        %v1444 = vpop.trf.xlu0
        %v1445 = vpop.trf.xlu0
        %v1446 = vpop.trf.xlu0
        %v1447 = vpop.trf.xlu0
        %v1448 = vpop.trf.xlu0
        %v1449 = vpop.trf.xlu0
        %v1450 = vpop.trf.xlu0
        %v1451 = vpop.trf.xlu0
        %v1452 = vpop.trf.xlu0
        %v1453 = vpop.trf.xlu0
        %1454 = vst [vmem:[%s367] sm:$0xff] %v1438
        %1455 = vst [vmem:[%s367 + $0x8] sm:$0xff] %v1439
        %1456 = vst [vmem:[%s367 + $0x10] sm:$0xff] %v1440
        %1457 = vst [vmem:[%s367 + $0x18] sm:$0xff] %v1441
        %s1458 = sand.u32 %s252, 1
        %s1459 = scalar_lea.sflag [#allocation3], %s1458
        %s1460 = sand.u32 %s252, 1
        %s1461 = smul.addr %s1460, 32
        %s1462 = scalar_lea.vmem [#allocation2], %s1461
        // Predicated region
        $region61: #{tpu_custom_call.1} parent=59 // pred_check
          %p1463 = pneg %p262
        $region62: #{tpu_custom_call.1} parent=59 // pred_check_branch
          %1465 = sbr.rel (%p1463) target = $region64
        $region63: #{tpu_custom_call.1} parent=59 // pred_region
          %s1467 = ssub.s32 512, 512
          %1468 = vsyncadd %s1459, %s1467
          %s1469 = smul.addr %s24, 4
          %s1470 = smul.addr %s1469, 128
          %s1471 = scalar_lea.hbm %s10, %s1470
          %s1472 = sshll.u32 %s1462, 4
          %s1473 = int_to_ptr.vmem [resolvable:$true] %s1472
          %1478 = dma.vmem_to_hbm [thread:$0]  %s1473, 512, %s1471, %s1459, 128, 128, 8
        $region64: #{tpu_custom_call.1} parent=59 // pred_fallthru
          _
      $region60: #{tpu_custom_call.1} parent=5 // pred_fallthru
        _
      %p1479 = scmp.le.s32.totalorder 2, %s19
      // Predicated region
      $region65: #{tpu_custom_call.1} parent=5 // pred_check
        %p1480 = pneg %p1479
      $region66: #{tpu_custom_call.1} parent=5 // pred_check_branch
        %1482 = sbr.rel (%p1480) target = $region68
      $region67: #{tpu_custom_call.1} parent=5 // pred_region
        %s1483 = ssub.s32 %s19, 2
        // Predicated region
        $region69: #{tpu_custom_call.1} parent=67 // pred_check
          %p1484 = pneg %p268
        $region70: #{tpu_custom_call.1} parent=67 // pred_check_branch
          %1486 = sbr.rel (%p1484) target = $region72
        $region71: #{tpu_custom_call.1} parent=67 // pred_region
          %s1487 = sand.u32 %s253, 1
          %s1488 = scalar_lea.sflag [#allocation3], %s1487
          %s1489 = sand.u32 %s253, 1
          %s1490 = smul.addr %s1489, 32
          %s1491 = scalar_lea.vmem [#allocation2], %s1490
          %1492 = dma.done %s1488, 512
        $region72: #{tpu_custom_call.1} parent=67 // pred_fallthru
          _
      $region68: #{tpu_custom_call.1} parent=5 // pred_fallthru
        _
    $region6: #{tpu_custom_call.1} parent=1 // loop_footer
      %s23 = sadd.s32 1, %s19
    $region7: #{tpu_custom_call.1} parent=1 // loop_footer_branch
      %18 = sbr.rel target = $region3
    $region8: #{tpu_custom_call.1} parent=1 // loop_exit
      _
    %1493 = vsyncpa [#allocation3], 1
    %s1494 = scalar_lea.sflag [#allocation3], 1
    %1495 = vsyncpa %s1494, 1

</llo_original>
